<compile_context>
chip_gen: v5e
topology: v5e:2x2
jax: 0.10.0
libtpu: 0.0.40
codegen_flags: <defaults>
</compile_context>

<pallas_src>
import numpy as np
import jax
import jax.numpy as jnp
from jax import lax
from jax.experimental import pallas as pl
from jax.experimental.pallas import tpu as pltpu

B, T, H = 2, 16, 1024
N_TV, N_PHN = 9, 46
LANES = 128                # packed width: [0:9]=TV, [9:55]=phn logits, [55]=argmax
PRED_LANE = N_TV + N_PHN   # = 55, spare lane carrying the argmax class id
TGT_LANE = LANES - 1       # lane of the target slab carrying the phoneme id
FIR_TAPS = 49              # LowPassFilterLayer(device, 10, 49, 9)
FIR_CUTOFF_HZ = 10.0
FIR_FS_HZ = 49.0
NEG_SLOPE = 0.01           # nn.LeakyReLU default
NEG_INF = -1e30            # logit mask value for padded / non-phoneme lanes


# ---------------------------------------------------------------------------
# FIR construction (host-side numpy -> trace-time constants)
# ---------------------------------------------------------------------------
def make_fir_coefs(num_taps, cutoff_hz, fs_hz):
    n = np.arange(num_taps) - (num_taps - 1) / 2.0
    h = 2.0 * (cutoff_hz / fs_hz) * np.sinc(2.0 * (cutoff_hz / fs_hz) * n)
    h = h * np.hamming(num_taps)
    h = h / h.sum()
    return h.astype(np.float32)


def make_fir_matrix(t, coefs):
    """Banded (t,t) matrix F so that (F @ x) == zero-padded 'same' conv along time."""
    taps = coefs.shape[0]
    pad = taps // 2
    f = np.zeros((t, t), np.float32)
    for i in range(t):
        lo = max(0, i - pad)
        hi = min(t, i + (taps - pad))
        for j in range(lo, hi):
            f[i, j] = coefs[j - i + pad]
    return f


def make_block_diag_fir_matrix(b, t, coefs):
    """Block-diagonal (b*t, b*t) FIR matrix: batches stay independent along time."""
    f = make_fir_matrix(t, coefs)
    out = np.zeros((b * t, b * t), np.float32)
    for i in range(b):
        out[i * t:(i + 1) * t, i * t:(i + 1) * t] = f
    return out


_FIR_COEFS = make_fir_coefs(FIR_TAPS, FIR_CUTOFF_HZ, FIR_FS_HZ)


def _multi_tc_chip():
    """True on chips where a batch-parallel grid can shard across cores."""
    try:
        kind = jax.devices()[0].device_kind.lower()
    except Exception:
        return False
    return any(tag in kind for tag in ("v7", "7x", "v4", "v5p"))


_BATCH_PARALLEL = _multi_tc_chip()


# ---------------------------------------------------------------------------
# Fused kernel: merged heads (one bf16 MXU pass) + banded FIR + masked losses
# ---------------------------------------------------------------------------
def aptai_fused_kernel(h_ref, w_ref, b_ref, fmat_ref, tvt_ref, out_ref, part_ref):
    hb = h_ref[0]                                                # (R, H) bf16
    # tv_head activation (tanh in f32 -> EUP; cast back for the MXU)
    th = jnp.tanh(hb.astype(jnp.float32)).astype(jnp.bfloat16)
    # phn_head activation directly in bf16 (bf16 VPU on v6e/v7x; emulated on v5e)
    lr = jnp.where(hb > 0, hb, hb * NEG_SLOPE)
    lhs = jnp.concatenate([th, lr], axis=-1)                     # (R, 2H) bf16

    # one MXU pass for both heads (K-stacked weights), bias folded after
    comb = jnp.dot(lhs, w_ref[...], preferred_element_type=jnp.float32) + b_ref[...]

    cols = lax.broadcasted_iota(jnp.int32, comb.shape, 1)        # (R, 128)
    tv_cols = cols < N_TV

    # ----- FIR low-pass along time as a banded matmul (bf16 MXU, f32 acc) ----
    tv_only = jnp.where(tv_cols, comb, 0.0).astype(jnp.bfloat16)
    filt = jnp.dot(fmat_ref[...], tv_only, preferred_element_type=jnp.float32)

    # ----- masked MSE partial sums (pad value -100.0 in TV lanes) ------------
    tvt = tvt_ref[0]                                             # (R, 128) f32
    tvm = tv_cols & (tvt != -100.0)
    d = jnp.where(tvm, filt - tvt, 0.0)
    sum_sq = jnp.sum(d * d)
    n_tv = jnp.sum(tvm.astype(jnp.float32))

    # ----- masked CE partial sums + argmax (ignore_index == 0) ---------------
    phn_cols = (cols >= N_TV) & (cols < N_TV + N_PHN)
    logits = jnp.where(phn_cols, comb, NEG_INF)
    tgt = jnp.sum(jnp.where(cols == TGT_LANE, tvt, 0.0), axis=-1,
                  keepdims=True).astype(jnp.int32)               # (R, 1)
    valid = tgt != 0
    m = jnp.max(logits, axis=-1, keepdims=True)
    lse = m + jnp.log(jnp.sum(jnp.exp(logits - m), axis=-1, keepdims=True))
    cls = cols - N_TV
    tgt_logit = jnp.sum(jnp.where(cls == tgt, comb, 0.0), axis=-1, keepdims=True)
    nll = jnp.where(valid, lse - tgt_logit, 0.0)
    sum_nll = jnp.sum(nll)
    n_phn = jnp.sum(valid.astype(jnp.float32))

    # argmax over classes (softmax monotone; min-index tie-break == torch.argmax)
    pred = jnp.min(jnp.where(logits == m, cls, jnp.int32(1 << 30)),
                   axis=-1, keepdims=True).astype(jnp.float32)   # (R, 1)

    # ----- packed lane-dense bf16 output --------------------------------------
    #   lanes [0:9]=filtered TVs, [9:55]=phn logits, [55]=argmax id (exact in bf16)
    packed = jnp.where(tv_cols, filt, comb)
    packed = jnp.where(cols == PRED_LANE, pred, packed)
    out_ref[0] = packed.astype(jnp.bfloat16)

    # ----- per-grid-step loss partial sums, lane-dense -------------------------
    lane = lax.broadcasted_iota(jnp.int32, (1, LANES), 1)
    part_ref[0] = jnp.where(lane == 0, sum_sq,
                  jnp.where(lane == 1, n_tv,
                  jnp.where(lane == 2, sum_nll,
                  jnp.where(lane == 3, n_phn, 0.0))))


# ---------------------------------------------------------------------------
# Wrapper
# ---------------------------------------------------------------------------
def _pack_heads(w_tv, b_tv, w_phn, b_phn, hdim):
    """K-stack the (H,9)/(H,46) heads into one (2H, 128) bf16 slab + f32 bias."""
    w = jnp.zeros((2 * hdim, LANES), jnp.float32)
    w = w.at[:hdim, :N_TV].set(w_tv)
    w = w.at[hdim:, N_TV:N_TV + N_PHN].set(w_phn)
    bias = jnp.zeros((1, LANES), jnp.float32)
    bias = bias.at[0, :N_TV].set(b_tv).at[0, N_TV:N_TV + N_PHN].set(b_phn)
    return w.astype(jnp.bfloat16), bias


@jax.jit
def aptai_forward(hidden, w_tv, b_tv, w_phn, b_phn, tv_targets, phn_targets):
    b, t, hdim = hidden.shape

    if _BATCH_PARALLEL:          # multi-TC chip: shard batches across cores
        g, r = b, t
        fmat_np = make_fir_matrix(t, _FIR_COEFS)
    else:                        # single TC: collapse to one grid step
        g, r = 1, b * t
        fmat_np = make_block_diag_fir_matrix(b, t, _FIR_COEFS)
    fmat = jnp.asarray(fmat_np, dtype=jnp.bfloat16)     # trace-time constant

    h_bf16 = hidden.astype(jnp.bfloat16).reshape(g, r, hdim)
    w128, bias128 = _pack_heads(w_tv, b_tv, w_phn, b_phn, hdim)

    # lane-dense target slab: TV targets in lanes 0..8 (pads = -100), the
    # phoneme target id folded (as float, exact) into lane 127.
    tvt128 = jnp.full((b, t, LANES), -100.0, jnp.float32)
    tvt128 = tvt128.at[..., :N_TV].set(tv_targets.astype(jnp.float32))
    tvt128 = tvt128.at[..., TGT_LANE].set(phn_targets.astype(jnp.float32))
    tvt128 = tvt128.reshape(g, r, LANES)

    packed, partials = pl.pallas_call(
        aptai_fused_kernel,
        grid=(g,),
        in_specs=[
            pl.BlockSpec((1, r, hdim), lambda i: (i, 0, 0)),    # hidden (bf16)
            # batch-invariant operands (grid-constant index maps). They are tiny
            # here, so default double-buffering costs <1 MiB; single-buffering
            # via pipeline_mode is skipped for API-compat safety.
            pl.BlockSpec((2 * hdim, LANES), lambda i: (0, 0)),  # K-stacked weights
            pl.BlockSpec((1, LANES), lambda i: (0, 0)),         # packed bias
            pl.BlockSpec((r, r), lambda i: (0, 0)),             # FIR band matrix
            pl.BlockSpec((1, r, LANES), lambda i: (i, 0, 0)),   # TV+phn target slab
        ],
        out_specs=(
            pl.BlockSpec((1, r, LANES), lambda i: (i, 0, 0)),   # packed bf16 output
            pl.BlockSpec((1, 1, LANES), lambda i: (i, 0, 0)),   # loss partial sums
        ),
        out_shape=(
            jax.ShapeDtypeStruct((g, r, LANES), jnp.bfloat16),
            jax.ShapeDtypeStruct((g, 1, LANES), jnp.float32),
        ),
        compiler_params=pltpu.CompilerParams(
            dimension_semantics=("parallel",),
            vmem_limit_bytes=32 * 1024 * 1024,
        ),
        cost_estimate=pl.CostEstimate(
            flops=int(g * (2 * r * (2 * hdim) * LANES + 2 * r * r * LANES)),
            transcendentals=int(g * r * (hdim + LANES)),
            bytes_accessed=int(g * r * hdim * 2 + 2 * hdim * LANES * 2
                               + LANES * 4 + r * r * 2
                               + g * r * LANES * (4 + 2) + g * LANES * 4),
        ),
    )(h_bf16, w128, bias128, fmat, tvt128)

    packed = packed.reshape(b, t, LANES)

    # tiny epilogue: combine per-grid-step partial sums into the final losses
    sums = jnp.sum(partials[:, 0, :4], axis=0)
    mse = sums[0] / jnp.maximum(sums[1], 1.0)
    ce = sums[2] / jnp.maximum(sums[3], 1.0)
    loss = 0.5 * mse + 0.5 * ce

    return {
        'loss': loss,
        'mse_loss': mse,
        'ce_loss': ce,
        'tvs_pred': packed[..., :N_TV].astype(jnp.float32),
        'phn_fc_pred': packed[..., PRED_LANE].astype(jnp.int32),
    }


# ---------------------------------------------------------------------------
# Pure-JAX f32 reference for the correctness check
# ---------------------------------------------------------------------------
def reference(hidden, w_tv, b_tv, w_phn, b_phn, coefs, tv_targets, phn_targets):
    th = jnp.tanh(hidden)
    lr = jnp.where(hidden > 0, hidden, NEG_SLOPE * hidden)
    tvs = th @ w_tv + b_tv
    logits = lr @ w_phn + b_phn
    pad_l = FIR_TAPS // 2
    xp = jnp.pad(tvs, ((0, 0), (pad_l, FIR_TAPS - 1 - pad_l), (0, 0)))
    out = jnp.zeros_like(tvs)
    for k in range(FIR_TAPS):
        out = out + xp[:, k:k + tvs.shape[1], :] * float(coefs[k])
    tv_mask = tv_targets != -100.0
    mse = jnp.sum(jnp.where(tv_mask, (out - tv_targets) ** 2, 0.0)) / jnp.sum(tv_mask)
    pmask = phn_targets != 0
    logp = jax.nn.log_softmax(logits, axis=-1)
    nll = -jnp.take_along_axis(logp, phn_targets[..., None], axis=-1)[..., 0]
    ce = jnp.sum(jnp.where(pmask, nll, 0.0)) / jnp.sum(pmask)
    pred = jnp.argmax(logits, axis=-1).astype(jnp.int32)
    return 0.5 * mse + 0.5 * ce, mse, ce, out, pred, logits


if __name__ == "__main__":
    key = jax.random.PRNGKey(0)
    ks = jax.random.split(key, 8)

    hidden = jax.random.normal(ks[0], (B, T, H), dtype=jnp.float32)

    bound = 1.0 / np.sqrt(H)
    w_tv = jax.random.uniform(ks[1], (H, N_TV), minval=-bound, maxval=bound)
    b_tv = jax.random.uniform(ks[2], (N_TV,), minval=-bound, maxval=bound)
    w_phn = jax.random.uniform(ks[3], (H, N_PHN), minval=-bound, maxval=bound)
    b_phn = jax.random.uniform(ks[4], (N_PHN,), minval=-bound, maxval=bound)

    # Targets: 9 TV trajectories with some -100.0 padding, phoneme ids with 0 = pad
    tv_targets = jax.random.normal(ks[5], (B, T, N_TV), dtype=jnp.float32)
    tv_targets = tv_targets.at[:, -3:, :].set(-100.0)
    phn_targets = jax.random.randint(ks[6], (B, T), 0, N_PHN, dtype=jnp.int32)
    phn_targets = phn_targets.at[:, -2:].set(0)
    phn_targets = phn_targets.at[:, 0].set(5)   # ensure at least one valid frame

    out = aptai_forward(hidden, w_tv, b_tv, w_phn, b_phn, tv_targets, phn_targets)
    jax.block_until_ready(out)

    ref_loss, ref_mse, ref_ce, ref_tvs, ref_pred, ref_logits = reference(
        hidden, w_tv, b_tv, w_phn, b_phn, _FIR_COEFS, tv_targets, phn_targets)

    np.testing.assert_allclose(np.asarray(out['tvs_pred']), np.asarray(ref_tvs),
                               rtol=2.5e-2, atol=2.5e-2)
    np.testing.assert_allclose(float(out['mse_loss']), float(ref_mse),
                               rtol=2e-2, atol=2e-2)
    np.testing.assert_allclose(float(out['ce_loss']), float(ref_ce),
                               rtol=2e-2, atol=2e-2)
    np.testing.assert_allclose(float(out['loss']), float(ref_loss),
                               rtol=2e-2, atol=2e-2)

    # argmax check: must match the f32 reference except where the top-2 logit gap
    # is below bf16 noise.
    lg = np.sort(np.asarray(ref_logits), axis=-1)
    gap = lg[..., -1] - lg[..., -2]
    mismatch = np.asarray(out['phn_fc_pred']) != np.asarray(ref_pred)
    assert np.all((~mismatch) | (gap < 5e-2)), "phoneme argmax mismatch"

    print("KERNEL_OK")
</pallas_src>

<mosaic_0001>
module attributes {stable_mosaic.version = 11 : i64} {
  func.func @aptai_fused_kernel(%arg0: i32, %arg1: memref<1x32x1024xbf16, #tpu.memory_space<vmem>>, %arg2: memref<2048x128xbf16, #tpu.memory_space<vmem>>, %arg3: memref<1x128xf32, #tpu.memory_space<vmem>>, %arg4: memref<32x32xbf16, #tpu.memory_space<vmem>>, %arg5: memref<1x32x128xf32, #tpu.memory_space<vmem>>, %arg6: memref<1x32x128xbf16, #tpu.memory_space<vmem>>, %arg7: memref<1x1x128xf32, #tpu.memory_space<vmem>>) attributes {dimension_semantics = [#tpu.dimension_semantics<parallel>], iteration_bounds = array<i64: 1>, scalar_prefetch = 0 : i64, scratch_operands = 0 : i64, tpu.core_type = #tpu.core_type<tc>, window_params = [{transform_indices = @transform_0, window_bounds = array<i64: 1, 32, 1024>}, {pipeline_mode = #tpu.pipeline_mode<synchronous>, transform_indices = @transform_1, window_bounds = array<i64: 2048, 128>}, {pipeline_mode = #tpu.pipeline_mode<synchronous>, transform_indices = @transform_2, window_bounds = array<i64: 1, 128>}, {pipeline_mode = #tpu.pipeline_mode<synchronous>, transform_indices = @transform_3, window_bounds = array<i64: 32, 32>}, {transform_indices = @transform_4, window_bounds = array<i64: 1, 32, 128>}, {transform_indices = @transform_5, window_bounds = array<i64: 1, 32, 128>}, {transform_indices = @transform_6, window_bounds = array<i64: 1, 1, 128>}]} {
    %c0 = arith.constant 0 : index
    %c0_0 = arith.constant 0 : index
    %c0_1 = arith.constant 0 : index
    %0 = vector.load %arg1[%c0, %c0_0, %c0_1] : memref<1x32x1024xbf16, #tpu.memory_space<vmem>>, vector<1x32x1024xbf16>
    %1 = vector.shape_cast %0 : vector<1x32x1024xbf16> to vector<32x1024xbf16>
    %2 = arith.extf %1 : vector<32x1024xbf16> to vector<32x1024xf32>
    %3 = math.tanh %2 : vector<32x1024xf32>
    %4 = arith.truncf %3 : vector<32x1024xf32> to vector<32x1024xbf16>
    %cst = arith.constant 0.000000e+00 : bf16
    %5 = vector.broadcast %cst : bf16 to vector<32x1024xbf16>
    %6 = arith.cmpf ogt, %1, %5 : vector<32x1024xbf16>
    %cst_2 = arith.constant 1.000980e-02 : bf16
    %7 = vector.broadcast %cst_2 : bf16 to vector<32x1024xbf16>
    %8 = arith.mulf %1, %7 : vector<32x1024xbf16>
    %9 = arith.select %6, %1, %8 : vector<32x1024xi1>, vector<32x1024xbf16>
    %10 = tpu.concatenate %4, %9 in 1 : vector<32x1024xbf16>, vector<32x1024xbf16> -> vector<32x2048xbf16>
    %c0_3 = arith.constant 0 : index
    %c0_4 = arith.constant 0 : index
    %11 = vector.load %arg2[%c0_3, %c0_4] : memref<2048x128xbf16, #tpu.memory_space<vmem>>, vector<2048x128xbf16>
    %cst_5 = arith.constant dense<0.000000e+00> : vector<32x128xf32>
    %12 = tpu.matmul %10, %11, %cst_5 {dimension_numbers = #tpu.dot_dimension_numbers<[1], [0], [0], [1], [0, 0, 1, 1], [], []>} : vector<32x2048xbf16>, vector<2048x128xbf16>, vector<32x128xf32> -> vector<32x128xf32>
    %c0_6 = arith.constant 0 : index
    %c0_7 = arith.constant 0 : index
    %13 = vector.load %arg3[%c0_6, %c0_7] : memref<1x128xf32, #tpu.memory_space<vmem>>, vector<1x128xf32>
    %14 = vector.broadcast %13 : vector<1x128xf32> to vector<32x128xf32>
    %15 = arith.addf %12, %14 : vector<32x128xf32>
    %16 = tpu.iota {dimensions = array<i32: 1>} : vector<32x128xi32>
    %c9_i32 = arith.constant 9 : i32
    %17 = vector.broadcast %c9_i32 : i32 to vector<32x128xi32>
    %18 = arith.cmpi slt, %16, %17 : vector<32x128xi32>
    %cst_8 = arith.constant 0.000000e+00 : f32
    %19 = vector.broadcast %cst_8 : f32 to vector<32x128xf32>
    %20 = arith.select %18, %15, %19 : vector<32x128xi1>, vector<32x128xf32>
    %21 = arith.truncf %20 : vector<32x128xf32> to vector<32x128xbf16>
    %c0_9 = arith.constant 0 : index
    %c0_10 = arith.constant 0 : index
    %22 = vector.load %arg4[%c0_9, %c0_10] : memref<32x32xbf16, #tpu.memory_space<vmem>>, vector<32x32xbf16>
    %cst_11 = arith.constant dense<0.000000e+00> : vector<32x128xf32>
    %23 = tpu.matmul %22, %21, %cst_11 {dimension_numbers = #tpu.dot_dimension_numbers<[1], [0], [0], [1], [0, 0, 1, 1], [], []>} : vector<32x32xbf16>, vector<32x128xbf16>, vector<32x128xf32> -> vector<32x128xf32>
    %c0_12 = arith.constant 0 : index
    %c0_13 = arith.constant 0 : index
    %c0_14 = arith.constant 0 : index
    %24 = vector.load %arg5[%c0_12, %c0_13, %c0_14] : memref<1x32x128xf32, #tpu.memory_space<vmem>>, vector<1x32x128xf32>
    %25 = vector.shape_cast %24 : vector<1x32x128xf32> to vector<32x128xf32>
    %cst_15 = arith.constant -1.000000e+02 : f32
    %26 = vector.broadcast %cst_15 : f32 to vector<32x128xf32>
    %27 = arith.cmpf one, %25, %26 : vector<32x128xf32>
    %28 = arith.andi %18, %27 : vector<32x128xi1>
    %29 = arith.subf %23, %25 : vector<32x128xf32>
    %cst_16 = arith.constant 0.000000e+00 : f32
    %30 = vector.broadcast %cst_16 : f32 to vector<32x128xf32>
    %31 = arith.select %28, %29, %30 : vector<32x128xi1>, vector<32x128xf32>
    %32 = arith.mulf %31, %31 : vector<32x128xf32>
    %33 = vector.shape_cast %32 : vector<32x128xf32> to vector<1x32x128xf32>
    %cst_17 = arith.constant dense<0.000000e+00> : vector<1xf32>
    %34 = vector.multi_reduction <add>, %33, %cst_17 [1, 2] : vector<1x32x128xf32> to vector<1xf32>
    %35 = vector.shape_cast %34 : vector<1xf32> to vector<1x1x1xf32>
    %36 = vector.extract %35[0, 0, 0] : f32 from vector<1x1x1xf32>
    %37 = arith.extui %28 : vector<32x128xi1> to vector<32x128xi32>
    %38 = arith.sitofp %37 : vector<32x128xi32> to vector<32x128xf32>
    %39 = vector.shape_cast %38 : vector<32x128xf32> to vector<1x32x128xf32>
    %cst_18 = arith.constant dense<0.000000e+00> : vector<1xf32>
    %40 = vector.multi_reduction <add>, %39, %cst_18 [1, 2] : vector<1x32x128xf32> to vector<1xf32>
    %41 = vector.shape_cast %40 : vector<1xf32> to vector<1x1x1xf32>
    %42 = vector.extract %41[0, 0, 0] : f32 from vector<1x1x1xf32>
    %c9_i32_19 = arith.constant 9 : i32
    %43 = vector.broadcast %c9_i32_19 : i32 to vector<32x128xi32>
    %44 = arith.cmpi sge, %16, %43 : vector<32x128xi32>
    %c55_i32 = arith.constant 55 : i32
    %45 = vector.broadcast %c55_i32 : i32 to vector<32x128xi32>
    %46 = arith.cmpi slt, %16, %45 : vector<32x128xi32>
    %47 = arith.andi %44, %46 : vector<32x128xi1>
    %cst_20 = arith.constant -1.000000e+30 : f32
    %48 = vector.broadcast %cst_20 : f32 to vector<32x128xf32>
    %49 = arith.select %47, %15, %48 : vector<32x128xi1>, vector<32x128xf32>
    %c127_i32 = arith.constant 127 : i32
    %50 = vector.broadcast %c127_i32 : i32 to vector<32x128xi32>
    %51 = arith.cmpi eq, %16, %50 : vector<32x128xi32>
    %cst_21 = arith.constant 0.000000e+00 : f32
    %52 = vector.broadcast %cst_21 : f32 to vector<32x128xf32>
    %53 = arith.select %51, %25, %52 : vector<32x128xi1>, vector<32x128xf32>
    %cst_22 = arith.constant dense<0.000000e+00> : vector<32xf32>
    %54 = vector.multi_reduction <add>, %53, %cst_22 [1] : vector<32x128xf32> to vector<32xf32>
    %55 = vector.shape_cast %54 : vector<32xf32> to vector<32x1xf32>
    %56 = arith.fptosi %55 : vector<32x1xf32> to vector<32x1xi32>
    %c0_i32 = arith.constant 0 : i32
    %57 = vector.broadcast %c0_i32 : i32 to vector<32x1xi32>
    %58 = arith.cmpi ne, %56, %57 : vector<32x1xi32>
    %cst_23 = arith.constant dense<0xFF800000> : vector<32xf32>
    %59 = vector.multi_reduction <maximumf>, %49, %cst_23 [1] : vector<32x128xf32> to vector<32xf32>
    %60 = vector.shape_cast %59 : vector<32xf32> to vector<32x1xf32>
    %61 = vector.broadcast %60 : vector<32x1xf32> to vector<32x128xf32>
    %62 = arith.subf %49, %61 : vector<32x128xf32>
    %63 = math.exp %62 : vector<32x128xf32>
    %cst_24 = arith.constant dense<0.000000e+00> : vector<32xf32>
    %64 = vector.multi_reduction <add>, %63, %cst_24 [1] : vector<32x128xf32> to vector<32xf32>
    %65 = vector.shape_cast %64 : vector<32xf32> to vector<32x1xf32>
    %66 = math.log %65 : vector<32x1xf32>
    %67 = arith.addf %60, %66 : vector<32x1xf32>
    %c9_i32_25 = arith.constant 9 : i32
    %68 = vector.broadcast %c9_i32_25 : i32 to vector<32x128xi32>
    %69 = arith.subi %16, %68 : vector<32x128xi32>
    %70 = vector.broadcast %56 : vector<32x1xi32> to vector<32x128xi32>
    %71 = arith.cmpi eq, %69, %70 : vector<32x128xi32>
    %cst_26 = arith.constant 0.000000e+00 : f32
    %72 = vector.broadcast %cst_26 : f32 to vector<32x128xf32>
    %73 = arith.select %71, %15, %72 : vector<32x128xi1>, vector<32x128xf32>
    %cst_27 = arith.constant dense<0.000000e+00> : vector<32xf32>
    %74 = vector.multi_reduction <add>, %73, %cst_27 [1] : vector<32x128xf32> to vector<32xf32>
    %75 = vector.shape_cast %74 : vector<32xf32> to vector<32x1xf32>
    %76 = arith.subf %67, %75 : vector<32x1xf32>
    %cst_28 = arith.constant 0.000000e+00 : f32
    %77 = vector.broadcast %cst_28 : f32 to vector<32x1xf32>
    %78 = arith.select %58, %76, %77 : vector<32x1xi1>, vector<32x1xf32>
    %79 = vector.shape_cast %78 : vector<32x1xf32> to vector<1x32x1xf32>
    %cst_29 = arith.constant dense<0.000000e+00> : vector<1xf32>
    %80 = vector.multi_reduction <add>, %79, %cst_29 [1, 2] : vector<1x32x1xf32> to vector<1xf32>
    %81 = vector.shape_cast %80 : vector<1xf32> to vector<1x1x1xf32>
    %82 = vector.extract %81[0, 0, 0] : f32 from vector<1x1x1xf32>
    %83 = arith.extui %58 : vector<32x1xi1> to vector<32x1xi32>
    %84 = arith.sitofp %83 : vector<32x1xi32> to vector<32x1xf32>
    %85 = vector.shape_cast %84 : vector<32x1xf32> to vector<1x32x1xf32>
    %cst_30 = arith.constant dense<0.000000e+00> : vector<1xf32>
    %86 = vector.multi_reduction <add>, %85, %cst_30 [1, 2] : vector<1x32x1xf32> to vector<1xf32>
    %87 = vector.shape_cast %86 : vector<1xf32> to vector<1x1x1xf32>
    %88 = vector.extract %87[0, 0, 0] : f32 from vector<1x1x1xf32>
    %89 = vector.broadcast %60 : vector<32x1xf32> to vector<32x128xf32>
    %90 = arith.cmpf oeq, %49, %89 : vector<32x128xf32>
    %c1073741824_i32 = arith.constant 1073741824 : i32
    %91 = vector.broadcast %c1073741824_i32 : i32 to vector<32x128xi32>
    %92 = arith.select %90, %69, %91 : vector<32x128xi1>, vector<32x128xi32>
    %cst_31 = arith.constant dense<2147483647> : vector<32xi32>
    %93 = vector.multi_reduction <minsi>, %92, %cst_31 [1] : vector<32x128xi32> to vector<32xi32>
    %94 = vector.shape_cast %93 : vector<32xi32> to vector<32x1xi32>
    %95 = arith.sitofp %94 : vector<32x1xi32> to vector<32x1xf32>
    %96 = arith.select %18, %23, %15 : vector<32x128xi1>, vector<32x128xf32>
    %c55_i32_32 = arith.constant 55 : i32
    %97 = vector.broadcast %c55_i32_32 : i32 to vector<32x128xi32>
    %98 = arith.cmpi eq, %16, %97 : vector<32x128xi32>
    %99 = vector.shape_cast %95 : vector<32x1xf32> to vector<32x1xf32>
    %100 = vector.broadcast %99 : vector<32x1xf32> to vector<32x128xf32>
    %101 = arith.select %98, %100, %96 : vector<32x128xi1>, vector<32x128xf32>
    %102 = arith.truncf %101 : vector<32x128xf32> to vector<32x128xbf16>
    %c0_33 = arith.constant 0 : index
    %c0_34 = arith.constant 0 : index
    %c0_35 = arith.constant 0 : index
    %103 = vector.load %arg6[%c0_33, %c0_34, %c0_35] : memref<1x32x128xbf16, #tpu.memory_space<vmem>>, vector<1x32x128xbf16>
    %104 = vector.shape_cast %103 : vector<1x32x128xbf16> to vector<32x128xbf16>
    %105 = vector.shape_cast %102 : vector<32x128xbf16> to vector<1x32x128xbf16>
    tpu.vector_store %arg6[%c0_33, %c0_34, %c0_35], %105 {strides = array<i32>} : memref<1x32x128xbf16, #tpu.memory_space<vmem>>, vector<1x32x128xbf16>,
    %106 = tpu.iota {dimensions = array<i32: 1>} : vector<1x128xi32>
    %c0_i32_36 = arith.constant 0 : i32
    %107 = vector.broadcast %c0_i32_36 : i32 to vector<1x128xi32>
    %108 = arith.cmpi eq, %106, %107 : vector<1x128xi32>
    %c1_i32 = arith.constant 1 : i32
    %109 = vector.broadcast %c1_i32 : i32 to vector<1x128xi32>
    %110 = arith.cmpi eq, %106, %109 : vector<1x128xi32>
    %c2_i32 = arith.constant 2 : i32
    %111 = vector.broadcast %c2_i32 : i32 to vector<1x128xi32>
    %112 = arith.cmpi eq, %106, %111 : vector<1x128xi32>
    %c3_i32 = arith.constant 3 : i32
    %113 = vector.broadcast %c3_i32 : i32 to vector<1x128xi32>
    %114 = arith.cmpi eq, %106, %113 : vector<1x128xi32>
    %cst_37 = arith.constant 0.000000e+00 : f32
    %115 = vector.broadcast %88 : f32 to vector<1x128xf32>
    %116 = vector.broadcast %cst_37 : f32 to vector<1x128xf32>
    %117 = arith.select %114, %115, %116 : vector<1x128xi1>, vector<1x128xf32>
    %118 = vector.broadcast %82 : f32 to vector<1x128xf32>
    %119 = arith.select %112, %118, %117 : vector<1x128xi1>, vector<1x128xf32>
    %120 = vector.broadcast %42 : f32 to vector<1x128xf32>
    %121 = arith.select %110, %120, %119 : vector<1x128xi1>, vector<1x128xf32>
    %122 = vector.broadcast %36 : f32 to vector<1x128xf32>
    %123 = arith.select %108, %122, %121 : vector<1x128xi1>, vector<1x128xf32>
    %c0_38 = arith.constant 0 : index
    %c0_39 = arith.constant 0 : index
    %c0_40 = arith.constant 0 : index
    %124 = vector.load %arg7[%c0_38, %c0_39, %c0_40] : memref<1x1x128xf32, #tpu.memory_space<vmem>>, vector<1x1x128xf32>
    %125 = vector.shape_cast %124 : vector<1x1x128xf32> to vector<1x128xf32>
    %126 = vector.shape_cast %123 : vector<1x128xf32> to vector<1x1x128xf32>
    tpu.vector_store %arg7[%c0_38, %c0_39, %c0_40], %126 {strides = array<i32>} : memref<1x1x128xf32, #tpu.memory_space<vmem>>, vector<1x1x128xf32>,
    return
  }
  func.func @transform_0(%arg0: i32) -> (i32, i32, i32) {
    %c0_i32 = arith.constant 0 : i32
    %c0_i32_0 = arith.constant 0 : i32
    %c0_i32_1 = arith.constant 0 : i32
    return %arg0, %c0_i32, %c0_i32_0 : i32, i32, i32
  }
  func.func @transform_1(%arg0: i32) -> (i32, i32) {
    %c0_i32 = arith.constant 0 : i32
    %c0_i32_0 = arith.constant 0 : i32
    %c0_i32_1 = arith.constant 0 : i32
    return %c0_i32, %c0_i32_0 : i32, i32
  }
  func.func @transform_2(%arg0: i32) -> (i32, i32) {
    %c0_i32 = arith.constant 0 : i32
    %c0_i32_0 = arith.constant 0 : i32
    %c0_i32_1 = arith.constant 0 : i32
    return %c0_i32, %c0_i32_0 : i32, i32
  }
  func.func @transform_3(%arg0: i32) -> (i32, i32) {
    %c0_i32 = arith.constant 0 : i32
    %c0_i32_0 = arith.constant 0 : i32
    %c0_i32_1 = arith.constant 0 : i32
    return %c0_i32, %c0_i32_0 : i32, i32
  }
  func.func @transform_4(%arg0: i32) -> (i32, i32, i32) {
    %c0_i32 = arith.constant 0 : i32
    %c0_i32_0 = arith.constant 0 : i32
    %c0_i32_1 = arith.constant 0 : i32
    return %arg0, %c0_i32, %c0_i32_0 : i32, i32, i32
  }
  func.func @transform_5(%arg0: i32) -> (i32, i32, i32) {
    %c0_i32 = arith.constant 0 : i32
    %c0_i32_0 = arith.constant 0 : i32
    %c0_i32_1 = arith.constant 0 : i32
    return %arg0, %c0_i32, %c0_i32_0 : i32, i32, i32
  }
  func.func @transform_6(%arg0: i32) -> (i32, i32, i32) {
    %c0_i32 = arith.constant 0 : i32
    %c0_i32_0 = arith.constant 0 : i32
    %c0_i32_1 = arith.constant 0 : i32
    return %arg0, %c0_i32, %c0_i32_0 : i32, i32, i32
  }
}

</mosaic_0001>

<llo_original>
// kernel: aptai_forward.1
$region0: #{aptai_forward.1}
  #allocation0 [shape = 'u32[]', space=smem, size = 0x4, offset = 0x4, fixed_abs, tag = 'smem constant byte address 0x4 - core index']
  #allocation1 [shape = 'u32[72,128]{1,0:T(1,128)}', space=vmem, size = 0x9000, scoped, tag = 'internal scratch']
  %s0 = inlined_call_operand.vmem [shape: bf16[1,32,1024], index: 0, kind: input, shape index: {}]
  %s1 = inlined_call_operand.vmem [shape: bf16[2048,128], index: 1, kind: input, shape index: {}]
  %s2 = inlined_call_operand.vmem [shape: f32[1,128], index: 2, kind: input, shape index: {}]
  %s3 = inlined_call_operand.vmem [shape: bf16[32,32], index: 3, kind: input, shape index: {}]
  %s4 = inlined_call_operand.vmem [shape: f32[1,32,128], index: 4, kind: input, shape index: {}]
  %s5 = inlined_call_operand.vmem [shape: bf16[1,32,128], index: 5, kind: output, shape index: {0}]
  %s6 = inlined_call_operand.vmem [shape: f32[1,1,128], index: 6, kind: output, shape index: {1}]
  %7 = xla_tuple %s5, %s6
  %s8 = sld [smem:[#allocation0]]
  $region38: #{aptai_forward.1} parent=0
    _
  %s10 = ssub.s32 1, %s8
  %s11 = scalar_select 0, %s10, %s8
  // Predicated region
  $region2: #{aptai_forward.1} parent=0 // pred_check
    _
  $region3: #{aptai_forward.1} parent=0 // pred_check_branch
    %13 = sbr.rel (0) target = $region5
  $region4: #{aptai_forward.1} parent=0 // pred_region
    _
  $region5: #{aptai_forward.1} parent=0 // pred_fallthru
    _
  // Predicated region
  $region6: #{aptai_forward.1} parent=0 // pred_check
    _
  $region7: #{aptai_forward.1} parent=0 // pred_check_branch
    %15 = sbr.rel (0) target = $region9
  $region8: #{aptai_forward.1} parent=0 // pred_region
    _
  $region9: #{aptai_forward.1} parent=0 // pred_fallthru
    _
  // Predicated region
  $region10: #{aptai_forward.1} parent=0 // pred_check
    _
  $region11: #{aptai_forward.1} parent=0 // pred_check_branch
    %17 = sbr.rel (0) target = $region13
  $region12: #{aptai_forward.1} parent=0 // pred_region
    _
  $region13: #{aptai_forward.1} parent=0 // pred_fallthru
    _
  // Predicated region
  $region14: #{aptai_forward.1} parent=0 // pred_check
    _
  $region15: #{aptai_forward.1} parent=0 // pred_check_branch
    %19 = sbr.rel (0) target = $region17
  $region16: #{aptai_forward.1} parent=0 // pred_region
    _
  $region17: #{aptai_forward.1} parent=0 // pred_fallthru
    _
  // Predicated region
  $region18: #{aptai_forward.1} parent=0 // pred_check
    _
  $region19: #{aptai_forward.1} parent=0 // pred_check_branch
    %21 = sbr.rel (0) target = $region21
  $region20: #{aptai_forward.1} parent=0 // pred_region
    _
  $region21: #{aptai_forward.1} parent=0 // pred_fallthru
    _
  %v23 = vld [vmem:[%s0] sm:$0xff]
  %v24 = vld [vmem:[%s0 + $0x8] sm:$0xff]
  %v25 = vld [vmem:[%s0 + $0x10] sm:$0xff]
  %v26 = vld [vmem:[%s0 + $0x18] sm:$0xff]
  %v27 = vld [vmem:[%s0 + $0x20] sm:$0xff]
  %v28 = vld [vmem:[%s0 + $0x28] sm:$0xff]
  %v29 = vld [vmem:[%s0 + $0x30] sm:$0xff]
  %v30 = vld [vmem:[%s0 + $0x38] sm:$0xff]
  %v31 = vld [vmem:[%s0 + $0x40] sm:$0xff]
  %v32 = vld [vmem:[%s0 + $0x48] sm:$0xff]
  %v33 = vld [vmem:[%s0 + $0x50] sm:$0xff]
  %v34 = vld [vmem:[%s0 + $0x58] sm:$0xff]
  %v35 = vld [vmem:[%s0 + $0x60] sm:$0xff]
  %v36 = vld [vmem:[%s0 + $0x68] sm:$0xff]
  %v37 = vld [vmem:[%s0 + $0x70] sm:$0xff]
  %v38 = vld [vmem:[%s0 + $0x78] sm:$0xff]
  %v39 = vunpack.c.l.bf16 %v23
  %v40 = vunpack.c.h.bf16 %v23
  %v41 = vunpack.c.l.bf16 %v24
  %v42 = vunpack.c.h.bf16 %v24
  %v43 = vunpack.c.l.bf16 %v25
  %v44 = vunpack.c.h.bf16 %v25
  %v45 = vunpack.c.l.bf16 %v26
  %v46 = vunpack.c.h.bf16 %v26
  %v47 = vunpack.c.l.bf16 %v27
  %v48 = vunpack.c.h.bf16 %v27
  %v49 = vunpack.c.l.bf16 %v28
  %v50 = vunpack.c.h.bf16 %v28
  %v51 = vunpack.c.l.bf16 %v29
  %v52 = vunpack.c.h.bf16 %v29
  %v53 = vunpack.c.l.bf16 %v30
  %v54 = vunpack.c.h.bf16 %v30
  %v55 = vunpack.c.l.bf16 %v31
  %v56 = vunpack.c.h.bf16 %v31
  %v57 = vunpack.c.l.bf16 %v32
  %v58 = vunpack.c.h.bf16 %v32
  %v59 = vunpack.c.l.bf16 %v33
  %v60 = vunpack.c.h.bf16 %v33
  %v61 = vunpack.c.l.bf16 %v34
  %v62 = vunpack.c.h.bf16 %v34
  %v63 = vunpack.c.l.bf16 %v35
  %v64 = vunpack.c.h.bf16 %v35
  %v65 = vunpack.c.l.bf16 %v36
  %v66 = vunpack.c.h.bf16 %v36
  %v67 = vunpack.c.l.bf16 %v37
  %v68 = vunpack.c.h.bf16 %v37
  %v69 = vunpack.c.l.bf16 %v38
  %v70 = vunpack.c.h.bf16 %v38
  %v71 = vtanh.pop %v39
  %v72 = vtanh.pop %v40
  %v73 = vtanh.pop %v41
  %v74 = vtanh.pop %v42
  %v75 = vtanh.pop %v43
  %v76 = vtanh.pop %v44
  %v77 = vtanh.pop %v45
  %v78 = vtanh.pop %v46
  %v79 = vtanh.pop %v47
  %v80 = vtanh.pop %v48
  %v81 = vtanh.pop %v49
  %v82 = vtanh.pop %v50
  %v83 = vtanh.pop %v51
  %v84 = vtanh.pop %v52
  %v85 = vtanh.pop %v53
  %v86 = vtanh.pop %v54
  %v87 = vtanh.pop %v55
  %v88 = vtanh.pop %v56
  %v89 = vtanh.pop %v57
  %v90 = vtanh.pop %v58
  %v91 = vtanh.pop %v59
  %v92 = vtanh.pop %v60
  %v93 = vtanh.pop %v61
  %v94 = vtanh.pop %v62
  %v95 = vtanh.pop %v63
  %v96 = vtanh.pop %v64
  %v97 = vtanh.pop %v65
  %v98 = vtanh.pop %v66
  %v99 = vtanh.pop %v67
  %v100 = vtanh.pop %v68
  %v101 = vtanh.pop %v69
  %v102 = vtanh.pop %v70
  %v103 = vpack.c.bf16 %v72, %v71
  %v104 = vpack.c.bf16 %v74, %v73
  %v105 = vpack.c.bf16 %v76, %v75
  %v106 = vpack.c.bf16 %v78, %v77
  %v107 = vpack.c.bf16 %v80, %v79
  %v108 = vpack.c.bf16 %v82, %v81
  %v109 = vpack.c.bf16 %v84, %v83
  %v110 = vpack.c.bf16 %v86, %v85
  %v111 = vpack.c.bf16 %v88, %v87
  %v112 = vpack.c.bf16 %v90, %v89
  %v113 = vpack.c.bf16 %v92, %v91
  %v114 = vpack.c.bf16 %v94, %v93
  %v115 = vpack.c.bf16 %v96, %v95
  %v116 = vpack.c.bf16 %v98, %v97
  %v117 = vpack.c.bf16 %v100, %v99
  %v118 = vpack.c.bf16 %v102, %v101
  %vm119 = vcmp.gt.f32.partialorder %v39, 0.0
  %vm120 = vcmp.gt.f32.partialorder %v40, 0.0
  %vm121 = vcmp.gt.f32.partialorder %v41, 0.0
  %vm122 = vcmp.gt.f32.partialorder %v42, 0.0
  %vm123 = vcmp.gt.f32.partialorder %v43, 0.0
  %vm124 = vcmp.gt.f32.partialorder %v44, 0.0
  %vm125 = vcmp.gt.f32.partialorder %v45, 0.0
  %vm126 = vcmp.gt.f32.partialorder %v46, 0.0
  %vm127 = vcmp.gt.f32.partialorder %v47, 0.0
  %vm128 = vcmp.gt.f32.partialorder %v48, 0.0
  %vm129 = vcmp.gt.f32.partialorder %v49, 0.0
  %vm130 = vcmp.gt.f32.partialorder %v50, 0.0
  %vm131 = vcmp.gt.f32.partialorder %v51, 0.0
  %vm132 = vcmp.gt.f32.partialorder %v52, 0.0
  %vm133 = vcmp.gt.f32.partialorder %v53, 0.0
  %vm134 = vcmp.gt.f32.partialorder %v54, 0.0
  %vm135 = vcmp.gt.f32.partialorder %v55, 0.0
  %vm136 = vcmp.gt.f32.partialorder %v56, 0.0
  %vm137 = vcmp.gt.f32.partialorder %v57, 0.0
  %vm138 = vcmp.gt.f32.partialorder %v58, 0.0
  %vm139 = vcmp.gt.f32.partialorder %v59, 0.0
  %vm140 = vcmp.gt.f32.partialorder %v60, 0.0
  %vm141 = vcmp.gt.f32.partialorder %v61, 0.0
  %vm142 = vcmp.gt.f32.partialorder %v62, 0.0
  %vm143 = vcmp.gt.f32.partialorder %v63, 0.0
  %vm144 = vcmp.gt.f32.partialorder %v64, 0.0
  %vm145 = vcmp.gt.f32.partialorder %v65, 0.0
  %vm146 = vcmp.gt.f32.partialorder %v66, 0.0
  %vm147 = vcmp.gt.f32.partialorder %v67, 0.0
  %vm148 = vcmp.gt.f32.partialorder %v68, 0.0
  %vm149 = vcmp.gt.f32.partialorder %v69, 0.0
  %vm150 = vcmp.gt.f32.partialorder %v70, 0.0
  %v151 = vmul.f32 %v39, 0.010009766
  %v152 = vmul.f32 %v40, 0.010009766
  %v153 = vmul.f32 %v41, 0.010009766
  %v154 = vmul.f32 %v42, 0.010009766
  %v155 = vmul.f32 %v43, 0.010009766
  %v156 = vmul.f32 %v44, 0.010009766
  %v157 = vmul.f32 %v45, 0.010009766
  %v158 = vmul.f32 %v46, 0.010009766
  %v159 = vmul.f32 %v47, 0.010009766
  %v160 = vmul.f32 %v48, 0.010009766
  %v161 = vmul.f32 %v49, 0.010009766
  %v162 = vmul.f32 %v50, 0.010009766
  %v163 = vmul.f32 %v51, 0.010009766
  %v164 = vmul.f32 %v52, 0.010009766
  %v165 = vmul.f32 %v53, 0.010009766
  %v166 = vmul.f32 %v54, 0.010009766
  %v167 = vmul.f32 %v55, 0.010009766
  %v168 = vmul.f32 %v56, 0.010009766
  %v169 = vmul.f32 %v57, 0.010009766
  %v170 = vmul.f32 %v58, 0.010009766
  %v171 = vmul.f32 %v59, 0.010009766
  %v172 = vmul.f32 %v60, 0.010009766
  %v173 = vmul.f32 %v61, 0.010009766
  %v174 = vmul.f32 %v62, 0.010009766
  %v175 = vmul.f32 %v63, 0.010009766
  %v176 = vmul.f32 %v64, 0.010009766
  %v177 = vmul.f32 %v65, 0.010009766
  %v178 = vmul.f32 %v66, 0.010009766
  %v179 = vmul.f32 %v67, 0.010009766
  %v180 = vmul.f32 %v68, 0.010009766
  %v181 = vmul.f32 %v69, 0.010009766
  %v182 = vmul.f32 %v70, 0.010009766
  %v183 = vpack.c.bf16 %v152, %v151
  %v184 = vpack.c.bf16 %v154, %v153
  %v185 = vpack.c.bf16 %v156, %v155
  %v186 = vpack.c.bf16 %v158, %v157
  %v187 = vpack.c.bf16 %v160, %v159
  %v188 = vpack.c.bf16 %v162, %v161
  %v189 = vpack.c.bf16 %v164, %v163
  %v190 = vpack.c.bf16 %v166, %v165
  %v191 = vpack.c.bf16 %v168, %v167
  %v192 = vpack.c.bf16 %v170, %v169
  %v193 = vpack.c.bf16 %v172, %v171
  %v194 = vpack.c.bf16 %v174, %v173
  %v195 = vpack.c.bf16 %v176, %v175
  %v196 = vpack.c.bf16 %v178, %v177
  %v197 = vpack.c.bf16 %v180, %v179
  %v198 = vpack.c.bf16 %v182, %v181
  %vm199 = vmpackc.low %vm120, %vm119
  %vm200 = vmpackc.low %vm122, %vm121
  %vm201 = vmpackc.low %vm124, %vm123
  %vm202 = vmpackc.low %vm126, %vm125
  %vm203 = vmpackc.low %vm128, %vm127
  %vm204 = vmpackc.low %vm130, %vm129
  %vm205 = vmpackc.low %vm132, %vm131
  %vm206 = vmpackc.low %vm134, %vm133
  %vm207 = vmpackc.low %vm136, %vm135
  %vm208 = vmpackc.low %vm138, %vm137
  %vm209 = vmpackc.low %vm140, %vm139
  %vm210 = vmpackc.low %vm142, %vm141
  %vm211 = vmpackc.low %vm144, %vm143
  %vm212 = vmpackc.low %vm146, %vm145
  %vm213 = vmpackc.low %vm148, %vm147
  %vm214 = vmpackc.low %vm150, %vm149
  %v215 = vsel %vm199, %v23, %v183
  %v216 = vsel %vm200, %v24, %v184
  %v217 = vsel %vm201, %v25, %v185
  %v218 = vsel %vm202, %v26, %v186
  %v219 = vsel %vm203, %v27, %v187
  %v220 = vsel %vm204, %v28, %v188
  %v221 = vsel %vm205, %v29, %v189
  %v222 = vsel %vm206, %v30, %v190
  %v223 = vsel %vm207, %v31, %v191
  %v224 = vsel %vm208, %v32, %v192
  %v225 = vsel %vm209, %v33, %v193
  %v226 = vsel %vm210, %v34, %v194
  %v227 = vsel %vm211, %v35, %v195
  %v228 = vsel %vm212, %v36, %v196
  %v229 = vsel %vm213, %v37, %v197
  %v230 = vsel %vm214, %v38, %v198
  %v247 = vunpack.c.l.b16 %v103
  %v248 = vunpack.c.h.b16 %v103
  %v249 = vunpack.c.l.b16 %v104
  %v250 = vunpack.c.h.b16 %v104
  %v251 = vunpack.c.l.b16 %v105
  %v252 = vunpack.c.h.b16 %v105
  %v253 = vunpack.c.l.b16 %v106
  %v254 = vunpack.c.h.b16 %v106
  %v255 = vunpack.c.l.b16 %v107
  %v256 = vunpack.c.h.b16 %v107
  %v257 = vunpack.c.l.b16 %v108
  %v258 = vunpack.c.h.b16 %v108
  %v259 = vunpack.c.l.b16 %v109
  %v260 = vunpack.c.h.b16 %v109
  %v261 = vunpack.c.l.b16 %v110
  %v262 = vunpack.c.h.b16 %v110
  %v263 = vunpack.c.l.b16 %v111
  %v264 = vunpack.c.h.b16 %v111
  %v265 = vunpack.c.l.b16 %v112
  %v266 = vunpack.c.h.b16 %v112
  %v267 = vunpack.c.l.b16 %v113
  %v268 = vunpack.c.h.b16 %v113
  %v269 = vunpack.c.l.b16 %v114
  %v270 = vunpack.c.h.b16 %v114
  %v271 = vunpack.c.l.b16 %v115
  %v272 = vunpack.c.h.b16 %v115
  %v273 = vunpack.c.l.b16 %v116
  %v274 = vunpack.c.h.b16 %v116
  %v275 = vunpack.c.l.b16 %v117
  %v276 = vunpack.c.h.b16 %v117
  %v277 = vunpack.c.l.b16 %v118
  %v278 = vunpack.c.h.b16 %v118
  %v279 = vpack.c.b16 %v255, %v247
  %v280 = vpack.c.b16 %v256, %v248
  %v281 = vpack.c.b16 %v257, %v249
  %v282 = vpack.c.b16 %v258, %v250
  %v283 = vpack.c.b16 %v259, %v251
  %v284 = vpack.c.b16 %v260, %v252
  %v285 = vpack.c.b16 %v261, %v253
  %v286 = vpack.c.b16 %v262, %v254
  %v287 = vpack.c.b16 %v271, %v263
  %v288 = vpack.c.b16 %v272, %v264
  %v289 = vpack.c.b16 %v273, %v265
  %v290 = vpack.c.b16 %v274, %v266
  %v291 = vpack.c.b16 %v275, %v267
  %v292 = vpack.c.b16 %v276, %v268
  %v293 = vpack.c.b16 %v277, %v269
  %v294 = vpack.c.b16 %v278, %v270
  %v327 = vunpack.c.l.b16 %v215
  %v328 = vunpack.c.h.b16 %v215
  %v329 = vunpack.c.l.b16 %v216
  %v330 = vunpack.c.h.b16 %v216
  %v331 = vunpack.c.l.b16 %v217
  %v332 = vunpack.c.h.b16 %v217
  %v333 = vunpack.c.l.b16 %v218
  %v334 = vunpack.c.h.b16 %v218
  %v335 = vunpack.c.l.b16 %v219
  %v336 = vunpack.c.h.b16 %v219
  %v337 = vunpack.c.l.b16 %v220
  %v338 = vunpack.c.h.b16 %v220
  %v339 = vunpack.c.l.b16 %v221
  %v340 = vunpack.c.h.b16 %v221
  %v341 = vunpack.c.l.b16 %v222
  %v342 = vunpack.c.h.b16 %v222
  %v343 = vunpack.c.l.b16 %v223
  %v344 = vunpack.c.h.b16 %v223
  %v345 = vunpack.c.l.b16 %v224
  %v346 = vunpack.c.h.b16 %v224
  %v347 = vunpack.c.l.b16 %v225
  %v348 = vunpack.c.h.b16 %v225
  %v349 = vunpack.c.l.b16 %v226
  %v350 = vunpack.c.h.b16 %v226
  %v351 = vunpack.c.l.b16 %v227
  %v352 = vunpack.c.h.b16 %v227
  %v353 = vunpack.c.l.b16 %v228
  %v354 = vunpack.c.h.b16 %v228
  %v355 = vunpack.c.l.b16 %v229
  %v356 = vunpack.c.h.b16 %v229
  %v357 = vunpack.c.l.b16 %v230
  %v358 = vunpack.c.h.b16 %v230
  %v359 = vpack.c.b16 %v335, %v327
  %v360 = vpack.c.b16 %v336, %v328
  %v361 = vpack.c.b16 %v337, %v329
  %v362 = vpack.c.b16 %v338, %v330
  %v363 = vpack.c.b16 %v339, %v331
  %v364 = vpack.c.b16 %v340, %v332
  %v365 = vpack.c.b16 %v341, %v333
  %v366 = vpack.c.b16 %v342, %v334
  %v367 = vpack.c.b16 %v351, %v343
  %v368 = vpack.c.b16 %v352, %v344
  %v369 = vpack.c.b16 %v353, %v345
  %v370 = vpack.c.b16 %v354, %v346
  %v371 = vpack.c.b16 %v355, %v347
  %v372 = vpack.c.b16 %v356, %v348
  %v373 = vpack.c.b16 %v357, %v349
  %v374 = vpack.c.b16 %v358, %v350
  %v391 = vld [vmem:[%s1] sm:$0xf]
  %v392 = vld [vmem:[%s1 + $0x4] sm:$0xf]
  %v393 = vld [vmem:[%s1 + $0x8] sm:$0xf]
  %v394 = vld [vmem:[%s1 + $0xc] sm:$0xf]
  %v395 = vld [vmem:[%s1 + $0x10] sm:$0xf]
  %v396 = vld [vmem:[%s1 + $0x14] sm:$0xf]
  %v397 = vld [vmem:[%s1 + $0x18] sm:$0xf]
  %v398 = vld [vmem:[%s1 + $0x1c] sm:$0xf]
  %v399 = vld [vmem:[%s1 + $0x20] sm:$0xf]
  %v400 = vld [vmem:[%s1 + $0x24] sm:$0xf]
  %v401 = vld [vmem:[%s1 + $0x28] sm:$0xf]
  %v402 = vld [vmem:[%s1 + $0x2c] sm:$0xf]
  %v403 = vld [vmem:[%s1 + $0x30] sm:$0xf]
  %v404 = vld [vmem:[%s1 + $0x34] sm:$0xf]
  %v405 = vld [vmem:[%s1 + $0x38] sm:$0xf]
  %v406 = vld [vmem:[%s1 + $0x3c] sm:$0xf]
  %v407 = vld [vmem:[%s1 + $0x40] sm:$0xf]
  %v408 = vld [vmem:[%s1 + $0x44] sm:$0xf]
  %v409 = vld [vmem:[%s1 + $0x48] sm:$0xf]
  %v410 = vld [vmem:[%s1 + $0x4c] sm:$0xf]
  %v411 = vld [vmem:[%s1 + $0x50] sm:$0xf]
  %v412 = vld [vmem:[%s1 + $0x54] sm:$0xf]
  %v413 = vld [vmem:[%s1 + $0x58] sm:$0xf]
  %v414 = vld [vmem:[%s1 + $0x5c] sm:$0xf]
  %v415 = vld [vmem:[%s1 + $0x60] sm:$0xf]
  %v416 = vld [vmem:[%s1 + $0x64] sm:$0xf]
  %v417 = vld [vmem:[%s1 + $0x68] sm:$0xf]
  %v418 = vld [vmem:[%s1 + $0x6c] sm:$0xf]
  %v419 = vld [vmem:[%s1 + $0x70] sm:$0xf]
  %v420 = vld [vmem:[%s1 + $0x74] sm:$0xf]
  %v421 = vld [vmem:[%s1 + $0x78] sm:$0xf]
  %v422 = vld [vmem:[%s1 + $0x7c] sm:$0xf]
  %v423 = vld [vmem:[%s1 + $0x80] sm:$0xf]
  %v424 = vld [vmem:[%s1 + $0x84] sm:$0xf]
  %v425 = vld [vmem:[%s1 + $0x88] sm:$0xf]
  %v426 = vld [vmem:[%s1 + $0x8c] sm:$0xf]
  %v427 = vld [vmem:[%s1 + $0x90] sm:$0xf]
  %v428 = vld [vmem:[%s1 + $0x94] sm:$0xf]
  %v429 = vld [vmem:[%s1 + $0x98] sm:$0xf]
  %v430 = vld [vmem:[%s1 + $0x9c] sm:$0xf]
  %v431 = vld [vmem:[%s1 + $0xa0] sm:$0xf]
  %v432 = vld [vmem:[%s1 + $0xa4] sm:$0xf]
  %v433 = vld [vmem:[%s1 + $0xa8] sm:$0xf]
  %v434 = vld [vmem:[%s1 + $0xac] sm:$0xf]
  %v435 = vld [vmem:[%s1 + $0xb0] sm:$0xf]
  %v436 = vld [vmem:[%s1 + $0xb4] sm:$0xf]
  %v437 = vld [vmem:[%s1 + $0xb8] sm:$0xf]
  %v438 = vld [vmem:[%s1 + $0xbc] sm:$0xf]
  %v439 = vld [vmem:[%s1 + $0xc0] sm:$0xf]
  %v440 = vld [vmem:[%s1 + $0xc4] sm:$0xf]
  %v441 = vld [vmem:[%s1 + $0xc8] sm:$0xf]
  %v442 = vld [vmem:[%s1 + $0xcc] sm:$0xf]
  %v443 = vld [vmem:[%s1 + $0xd0] sm:$0xf]
  %v444 = vld [vmem:[%s1 + $0xd4] sm:$0xf]
  %v445 = vld [vmem:[%s1 + $0xd8] sm:$0xf]
  %v446 = vld [vmem:[%s1 + $0xdc] sm:$0xf]
  %v447 = vld [vmem:[%s1 + $0xe0] sm:$0xf]
  %v448 = vld [vmem:[%s1 + $0xe4] sm:$0xf]
  %v449 = vld [vmem:[%s1 + $0xe8] sm:$0xf]
  %v450 = vld [vmem:[%s1 + $0xec] sm:$0xf]
  %v451 = vld [vmem:[%s1 + $0xf0] sm:$0xf]
  %v452 = vld [vmem:[%s1 + $0xf4] sm:$0xf]
  %v453 = vld [vmem:[%s1 + $0xf8] sm:$0xf]
  %v454 = vld [vmem:[%s1 + $0xfc] sm:$0xf]
  %v455 = vld [vmem:[%s1 + $0x100] sm:$0xf]
  %v456 = vld [vmem:[%s1 + $0x104] sm:$0xf]
  %v457 = vld [vmem:[%s1 + $0x108] sm:$0xf]
  %v458 = vld [vmem:[%s1 + $0x10c] sm:$0xf]
  %v459 = vld [vmem:[%s1 + $0x110] sm:$0xf]
  %v460 = vld [vmem:[%s1 + $0x114] sm:$0xf]
  %v461 = vld [vmem:[%s1 + $0x118] sm:$0xf]
  %v462 = vld [vmem:[%s1 + $0x11c] sm:$0xf]
  %v463 = vld [vmem:[%s1 + $0x120] sm:$0xf]
  %v464 = vld [vmem:[%s1 + $0x124] sm:$0xf]
  %v465 = vld [vmem:[%s1 + $0x128] sm:$0xf]
  %v466 = vld [vmem:[%s1 + $0x12c] sm:$0xf]
  %v467 = vld [vmem:[%s1 + $0x130] sm:$0xf]
  %v468 = vld [vmem:[%s1 + $0x134] sm:$0xf]
  %v469 = vld [vmem:[%s1 + $0x138] sm:$0xf]
  %v470 = vld [vmem:[%s1 + $0x13c] sm:$0xf]
  %v471 = vld [vmem:[%s1 + $0x140] sm:$0xf]
  %v472 = vld [vmem:[%s1 + $0x144] sm:$0xf]
  %v473 = vld [vmem:[%s1 + $0x148] sm:$0xf]
  %v474 = vld [vmem:[%s1 + $0x14c] sm:$0xf]
  %v475 = vld [vmem:[%s1 + $0x150] sm:$0xf]
  %v476 = vld [vmem:[%s1 + $0x154] sm:$0xf]
  %v477 = vld [vmem:[%s1 + $0x158] sm:$0xf]
  %v478 = vld [vmem:[%s1 + $0x15c] sm:$0xf]
  %v479 = vld [vmem:[%s1 + $0x160] sm:$0xf]
  %v480 = vld [vmem:[%s1 + $0x164] sm:$0xf]
  %v481 = vld [vmem:[%s1 + $0x168] sm:$0xf]
  %v482 = vld [vmem:[%s1 + $0x16c] sm:$0xf]
  %v483 = vld [vmem:[%s1 + $0x170] sm:$0xf]
  %v484 = vld [vmem:[%s1 + $0x174] sm:$0xf]
  %v485 = vld [vmem:[%s1 + $0x178] sm:$0xf]
  %v486 = vld [vmem:[%s1 + $0x17c] sm:$0xf]
  %v487 = vld [vmem:[%s1 + $0x180] sm:$0xf]
  %v488 = vld [vmem:[%s1 + $0x184] sm:$0xf]
  %v489 = vld [vmem:[%s1 + $0x188] sm:$0xf]
  %v490 = vld [vmem:[%s1 + $0x18c] sm:$0xf]
  %v491 = vld [vmem:[%s1 + $0x190] sm:$0xf]
  %v492 = vld [vmem:[%s1 + $0x194] sm:$0xf]
  %v493 = vld [vmem:[%s1 + $0x198] sm:$0xf]
  %v494 = vld [vmem:[%s1 + $0x19c] sm:$0xf]
  %v495 = vld [vmem:[%s1 + $0x1a0] sm:$0xf]
  %v496 = vld [vmem:[%s1 + $0x1a4] sm:$0xf]
  %v497 = vld [vmem:[%s1 + $0x1a8] sm:$0xf]
  %v498 = vld [vmem:[%s1 + $0x1ac] sm:$0xf]
  %v499 = vld [vmem:[%s1 + $0x1b0] sm:$0xf]
  %v500 = vld [vmem:[%s1 + $0x1b4] sm:$0xf]
  %v501 = vld [vmem:[%s1 + $0x1b8] sm:$0xf]
  %v502 = vld [vmem:[%s1 + $0x1bc] sm:$0xf]
  %v503 = vld [vmem:[%s1 + $0x1c0] sm:$0xf]
  %v504 = vld [vmem:[%s1 + $0x1c4] sm:$0xf]
  %v505 = vld [vmem:[%s1 + $0x1c8] sm:$0xf]
  %v506 = vld [vmem:[%s1 + $0x1cc] sm:$0xf]
  %v507 = vld [vmem:[%s1 + $0x1d0] sm:$0xf]
  %v508 = vld [vmem:[%s1 + $0x1d4] sm:$0xf]
  %v509 = vld [vmem:[%s1 + $0x1d8] sm:$0xf]
  %v510 = vld [vmem:[%s1 + $0x1dc] sm:$0xf]
  %v511 = vld [vmem:[%s1 + $0x1e0] sm:$0xf]
  %v512 = vld [vmem:[%s1 + $0x1e4] sm:$0xf]
  %v513 = vld [vmem:[%s1 + $0x1e8] sm:$0xf]
  %v514 = vld [vmem:[%s1 + $0x1ec] sm:$0xf]
  %v515 = vld [vmem:[%s1 + $0x1f0] sm:$0xf]
  %v516 = vld [vmem:[%s1 + $0x1f4] sm:$0xf]
  %v517 = vld [vmem:[%s1 + $0x1f8] sm:$0xf]
  %v518 = vld [vmem:[%s1 + $0x1fc] sm:$0xf]
  %v519 = vld [vmem:[%s1 + $0x200] sm:$0xf]
  %v520 = vld [vmem:[%s1 + $0x204] sm:$0xf]
  %v521 = vld [vmem:[%s1 + $0x208] sm:$0xf]
  %v522 = vld [vmem:[%s1 + $0x20c] sm:$0xf]
  %v523 = vld [vmem:[%s1 + $0x210] sm:$0xf]
  %v524 = vld [vmem:[%s1 + $0x214] sm:$0xf]
  %v525 = vld [vmem:[%s1 + $0x218] sm:$0xf]
  %v526 = vld [vmem:[%s1 + $0x21c] sm:$0xf]
  %v527 = vld [vmem:[%s1 + $0x220] sm:$0xf]
  %v528 = vld [vmem:[%s1 + $0x224] sm:$0xf]
  %v529 = vld [vmem:[%s1 + $0x228] sm:$0xf]
  %v530 = vld [vmem:[%s1 + $0x22c] sm:$0xf]
  %v531 = vld [vmem:[%s1 + $0x230] sm:$0xf]
  %v532 = vld [vmem:[%s1 + $0x234] sm:$0xf]
  %v533 = vld [vmem:[%s1 + $0x238] sm:$0xf]
  %v534 = vld [vmem:[%s1 + $0x23c] sm:$0xf]
  %v535 = vld [vmem:[%s1 + $0x240] sm:$0xf]
  %v536 = vld [vmem:[%s1 + $0x244] sm:$0xf]
  %v537 = vld [vmem:[%s1 + $0x248] sm:$0xf]
  %v538 = vld [vmem:[%s1 + $0x24c] sm:$0xf]
  %v539 = vld [vmem:[%s1 + $0x250] sm:$0xf]
  %v540 = vld [vmem:[%s1 + $0x254] sm:$0xf]
  %v541 = vld [vmem:[%s1 + $0x258] sm:$0xf]
  %v542 = vld [vmem:[%s1 + $0x25c] sm:$0xf]
  %v543 = vld [vmem:[%s1 + $0x260] sm:$0xf]
  %v544 = vld [vmem:[%s1 + $0x264] sm:$0xf]
  %v545 = vld [vmem:[%s1 + $0x268] sm:$0xf]
  %v546 = vld [vmem:[%s1 + $0x26c] sm:$0xf]
  %v547 = vld [vmem:[%s1 + $0x270] sm:$0xf]
  %v548 = vld [vmem:[%s1 + $0x274] sm:$0xf]
  %v549 = vld [vmem:[%s1 + $0x278] sm:$0xf]
  %v550 = vld [vmem:[%s1 + $0x27c] sm:$0xf]
  %v551 = vld [vmem:[%s1 + $0x280] sm:$0xf]
  %v552 = vld [vmem:[%s1 + $0x284] sm:$0xf]
  %v553 = vld [vmem:[%s1 + $0x288] sm:$0xf]
  %v554 = vld [vmem:[%s1 + $0x28c] sm:$0xf]
  %v555 = vld [vmem:[%s1 + $0x290] sm:$0xf]
  %v556 = vld [vmem:[%s1 + $0x294] sm:$0xf]
  %v557 = vld [vmem:[%s1 + $0x298] sm:$0xf]
  %v558 = vld [vmem:[%s1 + $0x29c] sm:$0xf]
  %v559 = vld [vmem:[%s1 + $0x2a0] sm:$0xf]
  %v560 = vld [vmem:[%s1 + $0x2a4] sm:$0xf]
  %v561 = vld [vmem:[%s1 + $0x2a8] sm:$0xf]
  %v562 = vld [vmem:[%s1 + $0x2ac] sm:$0xf]
  %v563 = vld [vmem:[%s1 + $0x2b0] sm:$0xf]
  %v564 = vld [vmem:[%s1 + $0x2b4] sm:$0xf]
  %v565 = vld [vmem:[%s1 + $0x2b8] sm:$0xf]
  %v566 = vld [vmem:[%s1 + $0x2bc] sm:$0xf]
  %v567 = vld [vmem:[%s1 + $0x2c0] sm:$0xf]
  %v568 = vld [vmem:[%s1 + $0x2c4] sm:$0xf]
  %v569 = vld [vmem:[%s1 + $0x2c8] sm:$0xf]
  %v570 = vld [vmem:[%s1 + $0x2cc] sm:$0xf]
  %v571 = vld [vmem:[%s1 + $0x2d0] sm:$0xf]
  %v572 = vld [vmem:[%s1 + $0x2d4] sm:$0xf]
  %v573 = vld [vmem:[%s1 + $0x2d8] sm:$0xf]
  %v574 = vld [vmem:[%s1 + $0x2dc] sm:$0xf]
  %v575 = vld [vmem:[%s1 + $0x2e0] sm:$0xf]
  %v576 = vld [vmem:[%s1 + $0x2e4] sm:$0xf]
  %v577 = vld [vmem:[%s1 + $0x2e8] sm:$0xf]
  %v578 = vld [vmem:[%s1 + $0x2ec] sm:$0xf]
  %v579 = vld [vmem:[%s1 + $0x2f0] sm:$0xf]
  %v580 = vld [vmem:[%s1 + $0x2f4] sm:$0xf]
  %v581 = vld [vmem:[%s1 + $0x2f8] sm:$0xf]
  %v582 = vld [vmem:[%s1 + $0x2fc] sm:$0xf]
  %v583 = vld [vmem:[%s1 + $0x300] sm:$0xf]
  %v584 = vld [vmem:[%s1 + $0x304] sm:$0xf]
  %v585 = vld [vmem:[%s1 + $0x308] sm:$0xf]
  %v586 = vld [vmem:[%s1 + $0x30c] sm:$0xf]
  %v587 = vld [vmem:[%s1 + $0x310] sm:$0xf]
  %v588 = vld [vmem:[%s1 + $0x314] sm:$0xf]
  %v589 = vld [vmem:[%s1 + $0x318] sm:$0xf]
  %v590 = vld [vmem:[%s1 + $0x31c] sm:$0xf]
  %v591 = vld [vmem:[%s1 + $0x320] sm:$0xf]
  %v592 = vld [vmem:[%s1 + $0x324] sm:$0xf]
  %v593 = vld [vmem:[%s1 + $0x328] sm:$0xf]
  %v594 = vld [vmem:[%s1 + $0x32c] sm:$0xf]
  %v595 = vld [vmem:[%s1 + $0x330] sm:$0xf]
  %v596 = vld [vmem:[%s1 + $0x334] sm:$0xf]
  %v597 = vld [vmem:[%s1 + $0x338] sm:$0xf]
  %v598 = vld [vmem:[%s1 + $0x33c] sm:$0xf]
  %v599 = vld [vmem:[%s1 + $0x340] sm:$0xf]
  %v600 = vld [vmem:[%s1 + $0x344] sm:$0xf]
  %v601 = vld [vmem:[%s1 + $0x348] sm:$0xf]
  %v602 = vld [vmem:[%s1 + $0x34c] sm:$0xf]
  %v603 = vld [vmem:[%s1 + $0x350] sm:$0xf]
  %v604 = vld [vmem:[%s1 + $0x354] sm:$0xf]
  %v605 = vld [vmem:[%s1 + $0x358] sm:$0xf]
  %v606 = vld [vmem:[%s1 + $0x35c] sm:$0xf]
  %v607 = vld [vmem:[%s1 + $0x360] sm:$0xf]
  %v608 = vld [vmem:[%s1 + $0x364] sm:$0xf]
  %v609 = vld [vmem:[%s1 + $0x368] sm:$0xf]
  %v610 = vld [vmem:[%s1 + $0x36c] sm:$0xf]
  %v611 = vld [vmem:[%s1 + $0x370] sm:$0xf]
  %v612 = vld [vmem:[%s1 + $0x374] sm:$0xf]
  %v613 = vld [vmem:[%s1 + $0x378] sm:$0xf]
  %v614 = vld [vmem:[%s1 + $0x37c] sm:$0xf]
  %v615 = vld [vmem:[%s1 + $0x380] sm:$0xf]
  %v616 = vld [vmem:[%s1 + $0x384] sm:$0xf]
  %v617 = vld [vmem:[%s1 + $0x388] sm:$0xf]
  %v618 = vld [vmem:[%s1 + $0x38c] sm:$0xf]
  %v619 = vld [vmem:[%s1 + $0x390] sm:$0xf]
  %v620 = vld [vmem:[%s1 + $0x394] sm:$0xf]
  %v621 = vld [vmem:[%s1 + $0x398] sm:$0xf]
  %v622 = vld [vmem:[%s1 + $0x39c] sm:$0xf]
  %v623 = vld [vmem:[%s1 + $0x3a0] sm:$0xf]
  %v624 = vld [vmem:[%s1 + $0x3a4] sm:$0xf]
  %v625 = vld [vmem:[%s1 + $0x3a8] sm:$0xf]
  %v626 = vld [vmem:[%s1 + $0x3ac] sm:$0xf]
  %v627 = vld [vmem:[%s1 + $0x3b0] sm:$0xf]
  %v628 = vld [vmem:[%s1 + $0x3b4] sm:$0xf]
  %v629 = vld [vmem:[%s1 + $0x3b8] sm:$0xf]
  %v630 = vld [vmem:[%s1 + $0x3bc] sm:$0xf]
  %v631 = vld [vmem:[%s1 + $0x3c0] sm:$0xf]
  %v632 = vld [vmem:[%s1 + $0x3c4] sm:$0xf]
  %v633 = vld [vmem:[%s1 + $0x3c8] sm:$0xf]
  %v634 = vld [vmem:[%s1 + $0x3cc] sm:$0xf]
  %v635 = vld [vmem:[%s1 + $0x3d0] sm:$0xf]
  %v636 = vld [vmem:[%s1 + $0x3d4] sm:$0xf]
  %v637 = vld [vmem:[%s1 + $0x3d8] sm:$0xf]
  %v638 = vld [vmem:[%s1 + $0x3dc] sm:$0xf]
  %v639 = vld [vmem:[%s1 + $0x3e0] sm:$0xf]
  %v640 = vld [vmem:[%s1 + $0x3e4] sm:$0xf]
  %v641 = vld [vmem:[%s1 + $0x3e8] sm:$0xf]
  %v642 = vld [vmem:[%s1 + $0x3ec] sm:$0xf]
  %v643 = vld [vmem:[%s1 + $0x3f0] sm:$0xf]
  %v644 = vld [vmem:[%s1 + $0x3f4] sm:$0xf]
  %v645 = vld [vmem:[%s1 + $0x3f8] sm:$0xf]
  %v646 = vld [vmem:[%s1 + $0x3fc] sm:$0xf]
  %v647 = vld [vmem:[%s2] sm:$0x1]
  %v649 = vperm.slane %v647, 0
  %v907 = vunpack.c.l.b16 %v391
  %v908 = vunpack.c.l.b16 %v392
  %v909 = vunpack.c.l.b16 %v393
  %v910 = vunpack.c.l.b16 %v394
  %v911 = vunpack.c.l.b16 %v395
  %v912 = vunpack.c.l.b16 %v396
  %v913 = vunpack.c.l.b16 %v397
  %v914 = vunpack.c.l.b16 %v398
  %v915 = vunpack.c.l.b16 %v399
  %v916 = vunpack.c.l.b16 %v400
  %v917 = vunpack.c.l.b16 %v401
  %v918 = vunpack.c.l.b16 %v402
  %v919 = vunpack.c.l.b16 %v403
  %v920 = vunpack.c.l.b16 %v404
  %v921 = vunpack.c.l.b16 %v405
  %v922 = vunpack.c.l.b16 %v406
  %v923 = vunpack.c.l.b16 %v407
  %v924 = vunpack.c.l.b16 %v408
  %v925 = vunpack.c.l.b16 %v409
  %v926 = vunpack.c.l.b16 %v410
  %v927 = vunpack.c.l.b16 %v411
  %v928 = vunpack.c.l.b16 %v412
  %v929 = vunpack.c.l.b16 %v413
  %v930 = vunpack.c.l.b16 %v414
  %v931 = vunpack.c.l.b16 %v415
  %v932 = vunpack.c.l.b16 %v416
  %v933 = vunpack.c.l.b16 %v417
  %v934 = vunpack.c.l.b16 %v418
  %v935 = vunpack.c.l.b16 %v419
  %v936 = vunpack.c.l.b16 %v420
  %v937 = vunpack.c.l.b16 %v421
  %v938 = vunpack.c.l.b16 %v422
  %v939 = vunpack.c.l.b16 %v423
  %v940 = vunpack.c.l.b16 %v424
  %v941 = vunpack.c.l.b16 %v425
  %v942 = vunpack.c.l.b16 %v426
  %v943 = vunpack.c.l.b16 %v427
  %v944 = vunpack.c.l.b16 %v428
  %v945 = vunpack.c.l.b16 %v429
  %v946 = vunpack.c.l.b16 %v430
  %v947 = vunpack.c.l.b16 %v431
  %v948 = vunpack.c.l.b16 %v432
  %v949 = vunpack.c.l.b16 %v433
  %v950 = vunpack.c.l.b16 %v434
  %v951 = vunpack.c.l.b16 %v435
  %v952 = vunpack.c.l.b16 %v436
  %v953 = vunpack.c.l.b16 %v437
  %v954 = vunpack.c.l.b16 %v438
  %v955 = vunpack.c.l.b16 %v439
  %v956 = vunpack.c.l.b16 %v440
  %v957 = vunpack.c.l.b16 %v441
  %v958 = vunpack.c.l.b16 %v442
  %v959 = vunpack.c.l.b16 %v443
  %v960 = vunpack.c.l.b16 %v444
  %v961 = vunpack.c.l.b16 %v445
  %v962 = vunpack.c.l.b16 %v446
  %v963 = vunpack.c.l.b16 %v447
  %v964 = vunpack.c.l.b16 %v448
  %v965 = vunpack.c.l.b16 %v449
  %v966 = vunpack.c.l.b16 %v450
  %v967 = vunpack.c.l.b16 %v451
  %v968 = vunpack.c.l.b16 %v452
  %v969 = vunpack.c.l.b16 %v453
  %v970 = vunpack.c.l.b16 %v454
  %v971 = vunpack.c.l.b16 %v455
  %v972 = vunpack.c.l.b16 %v456
  %v973 = vunpack.c.l.b16 %v457
  %v974 = vunpack.c.l.b16 %v458
  %v975 = vunpack.c.l.b16 %v459
  %v976 = vunpack.c.l.b16 %v460
  %v977 = vunpack.c.l.b16 %v461
  %v978 = vunpack.c.l.b16 %v462
  %v979 = vunpack.c.l.b16 %v463
  %v980 = vunpack.c.l.b16 %v464
  %v981 = vunpack.c.l.b16 %v465
  %v982 = vunpack.c.l.b16 %v466
  %v983 = vunpack.c.l.b16 %v467
  %v984 = vunpack.c.l.b16 %v468
  %v985 = vunpack.c.l.b16 %v469
  %v986 = vunpack.c.l.b16 %v470
  %v987 = vunpack.c.l.b16 %v471
  %v988 = vunpack.c.l.b16 %v472
  %v989 = vunpack.c.l.b16 %v473
  %v990 = vunpack.c.l.b16 %v474
  %v991 = vunpack.c.l.b16 %v475
  %v992 = vunpack.c.l.b16 %v476
  %v993 = vunpack.c.l.b16 %v477
  %v994 = vunpack.c.l.b16 %v478
  %v995 = vunpack.c.l.b16 %v479
  %v996 = vunpack.c.l.b16 %v480
  %v997 = vunpack.c.l.b16 %v481
  %v998 = vunpack.c.l.b16 %v482
  %v999 = vunpack.c.l.b16 %v483
  %v1000 = vunpack.c.l.b16 %v484
  %v1001 = vunpack.c.l.b16 %v485
  %v1002 = vunpack.c.l.b16 %v486
  %v1003 = vunpack.c.l.b16 %v487
  %v1004 = vunpack.c.l.b16 %v488
  %v1005 = vunpack.c.l.b16 %v489
  %v1006 = vunpack.c.l.b16 %v490
  %v1007 = vunpack.c.l.b16 %v491
  %v1008 = vunpack.c.l.b16 %v492
  %v1009 = vunpack.c.l.b16 %v493
  %v1010 = vunpack.c.l.b16 %v494
  %v1011 = vunpack.c.l.b16 %v495
  %v1012 = vunpack.c.l.b16 %v496
  %v1013 = vunpack.c.l.b16 %v497
  %v1014 = vunpack.c.l.b16 %v498
  %v1015 = vunpack.c.l.b16 %v499
  %v1016 = vunpack.c.l.b16 %v500
  %v1017 = vunpack.c.l.b16 %v501
  %v1018 = vunpack.c.l.b16 %v502
  %v1019 = vunpack.c.l.b16 %v503
  %v1020 = vunpack.c.l.b16 %v504
  %v1021 = vunpack.c.l.b16 %v505
  %v1022 = vunpack.c.l.b16 %v506
  %v1023 = vunpack.c.l.b16 %v507
  %v1024 = vunpack.c.l.b16 %v508
  %v1025 = vunpack.c.l.b16 %v509
  %v1026 = vunpack.c.l.b16 %v510
  %v1027 = vunpack.c.l.b16 %v511
  %v1028 = vunpack.c.l.b16 %v512
  %v1029 = vunpack.c.l.b16 %v513
  %v1030 = vunpack.c.l.b16 %v514
  %v1031 = vunpack.c.l.b16 %v515
  %v1032 = vunpack.c.l.b16 %v516
  %v1033 = vunpack.c.l.b16 %v517
  %v1034 = vunpack.c.l.b16 %v518
  %v1035 = vunpack.c.l.b16 %v519
  %v1036 = vunpack.c.l.b16 %v520
  %v1037 = vunpack.c.l.b16 %v521
  %v1038 = vunpack.c.l.b16 %v522
  %v1039 = vunpack.c.l.b16 %v523
  %v1040 = vunpack.c.l.b16 %v524
  %v1041 = vunpack.c.l.b16 %v525
  %v1042 = vunpack.c.l.b16 %v526
  %v1043 = vunpack.c.l.b16 %v527
  %v1044 = vunpack.c.l.b16 %v528
  %v1045 = vunpack.c.l.b16 %v529
  %v1046 = vunpack.c.l.b16 %v530
  %v1047 = vunpack.c.l.b16 %v531
  %v1048 = vunpack.c.l.b16 %v532
  %v1049 = vunpack.c.l.b16 %v533
  %v1050 = vunpack.c.l.b16 %v534
  %v1051 = vunpack.c.l.b16 %v535
  %v1052 = vunpack.c.l.b16 %v536
  %v1053 = vunpack.c.l.b16 %v537
  %v1054 = vunpack.c.l.b16 %v538
  %v1055 = vunpack.c.l.b16 %v539
  %v1056 = vunpack.c.l.b16 %v540
  %v1057 = vunpack.c.l.b16 %v541
  %v1058 = vunpack.c.l.b16 %v542
  %v1059 = vunpack.c.l.b16 %v543
  %v1060 = vunpack.c.l.b16 %v544
  %v1061 = vunpack.c.l.b16 %v545
  %v1062 = vunpack.c.l.b16 %v546
  %v1063 = vunpack.c.l.b16 %v547
  %v1064 = vunpack.c.l.b16 %v548
  %v1065 = vunpack.c.l.b16 %v549
  %v1066 = vunpack.c.l.b16 %v550
  %v1067 = vunpack.c.l.b16 %v551
  %v1068 = vunpack.c.l.b16 %v552
  %v1069 = vunpack.c.l.b16 %v553
  %v1070 = vunpack.c.l.b16 %v554
  %v1071 = vunpack.c.l.b16 %v555
  %v1072 = vunpack.c.l.b16 %v556
  %v1073 = vunpack.c.l.b16 %v557
  %v1074 = vunpack.c.l.b16 %v558
  %v1075 = vunpack.c.l.b16 %v559
  %v1076 = vunpack.c.l.b16 %v560
  %v1077 = vunpack.c.l.b16 %v561
  %v1078 = vunpack.c.l.b16 %v562
  %v1079 = vunpack.c.l.b16 %v563
  %v1080 = vunpack.c.l.b16 %v564
  %v1081 = vunpack.c.l.b16 %v565
  %v1082 = vunpack.c.l.b16 %v566
  %v1083 = vunpack.c.l.b16 %v567
  %v1084 = vunpack.c.l.b16 %v568
  %v1085 = vunpack.c.l.b16 %v569
  %v1086 = vunpack.c.l.b16 %v570
  %v1087 = vunpack.c.l.b16 %v571
  %v1088 = vunpack.c.l.b16 %v572
  %v1089 = vunpack.c.l.b16 %v573
  %v1090 = vunpack.c.l.b16 %v574
  %v1091 = vunpack.c.l.b16 %v575
  %v1092 = vunpack.c.l.b16 %v576
  %v1093 = vunpack.c.l.b16 %v577
  %v1094 = vunpack.c.l.b16 %v578
  %v1095 = vunpack.c.l.b16 %v579
  %v1096 = vunpack.c.l.b16 %v580
  %v1097 = vunpack.c.l.b16 %v581
  %v1098 = vunpack.c.l.b16 %v582
  %v1099 = vunpack.c.l.b16 %v583
  %v1100 = vunpack.c.l.b16 %v584
  %v1101 = vunpack.c.l.b16 %v585
  %v1102 = vunpack.c.l.b16 %v586
  %v1103 = vunpack.c.l.b16 %v587
  %v1104 = vunpack.c.l.b16 %v588
  %v1105 = vunpack.c.l.b16 %v589
  %v1106 = vunpack.c.l.b16 %v590
  %v1107 = vunpack.c.l.b16 %v591
  %v1108 = vunpack.c.l.b16 %v592
  %v1109 = vunpack.c.l.b16 %v593
  %v1110 = vunpack.c.l.b16 %v594
  %v1111 = vunpack.c.l.b16 %v595
  %v1112 = vunpack.c.l.b16 %v596
  %v1113 = vunpack.c.l.b16 %v597
  %v1114 = vunpack.c.l.b16 %v598
  %v1115 = vunpack.c.l.b16 %v599
  %v1116 = vunpack.c.l.b16 %v600
  %v1117 = vunpack.c.l.b16 %v601
  %v1118 = vunpack.c.l.b16 %v602
  %v1119 = vunpack.c.l.b16 %v603
  %v1120 = vunpack.c.l.b16 %v604
  %v1121 = vunpack.c.l.b16 %v605
  %v1122 = vunpack.c.l.b16 %v606
  %v1123 = vunpack.c.l.b16 %v607
  %v1124 = vunpack.c.l.b16 %v608
  %v1125 = vunpack.c.l.b16 %v609
  %v1126 = vunpack.c.l.b16 %v610
  %v1127 = vunpack.c.l.b16 %v611
  %v1128 = vunpack.c.l.b16 %v612
  %v1129 = vunpack.c.l.b16 %v613
  %v1130 = vunpack.c.l.b16 %v614
  %v1131 = vunpack.c.l.b16 %v615
  %v1132 = vunpack.c.l.b16 %v616
  %v1133 = vunpack.c.l.b16 %v617
  %v1134 = vunpack.c.l.b16 %v618
  %v1135 = vunpack.c.l.b16 %v619
  %v1136 = vunpack.c.l.b16 %v620
  %v1137 = vunpack.c.l.b16 %v621
  %v1138 = vunpack.c.l.b16 %v622
  %v1139 = vunpack.c.l.b16 %v623
  %v1140 = vunpack.c.l.b16 %v624
  %v1141 = vunpack.c.l.b16 %v625
  %v1142 = vunpack.c.l.b16 %v626
  %v1143 = vunpack.c.l.b16 %v627
  %v1144 = vunpack.c.l.b16 %v628
  %v1145 = vunpack.c.l.b16 %v629
  %v1146 = vunpack.c.l.b16 %v630
  %v1147 = vunpack.c.l.b16 %v631
  %v1148 = vunpack.c.l.b16 %v632
  %v1149 = vunpack.c.l.b16 %v633
  %v1150 = vunpack.c.l.b16 %v634
  %v1151 = vunpack.c.l.b16 %v635
  %v1152 = vunpack.c.l.b16 %v636
  %v1153 = vunpack.c.l.b16 %v637
  %v1154 = vunpack.c.l.b16 %v638
  %v1155 = vunpack.c.l.b16 %v639
  %v1156 = vunpack.c.l.b16 %v640
  %v1157 = vunpack.c.l.b16 %v641
  %v1158 = vunpack.c.l.b16 %v642
  %v1159 = vunpack.c.l.b16 %v643
  %v1160 = vunpack.c.l.b16 %v644
  %v1161 = vunpack.c.l.b16 %v645
  %v1162 = vunpack.c.l.b16 %v646
  %v1163 = vpack.c.b16 %v908, %v907
  %v1164 = vpack.c.b16 %v910, %v909
  %v1165 = vpack.c.b16 %v912, %v911
  %v1166 = vpack.c.b16 %v914, %v913
  %v1167 = vpack.c.b16 %v916, %v915
  %v1168 = vpack.c.b16 %v918, %v917
  %v1169 = vpack.c.b16 %v920, %v919
  %v1170 = vpack.c.b16 %v922, %v921
  %v1171 = vpack.c.b16 %v924, %v923
  %v1172 = vpack.c.b16 %v926, %v925
  %v1173 = vpack.c.b16 %v928, %v927
  %v1174 = vpack.c.b16 %v930, %v929
  %v1175 = vpack.c.b16 %v932, %v931
  %v1176 = vpack.c.b16 %v934, %v933
  %v1177 = vpack.c.b16 %v936, %v935
  %v1178 = vpack.c.b16 %v938, %v937
  %v1179 = vpack.c.b16 %v940, %v939
  %v1180 = vpack.c.b16 %v942, %v941
  %v1181 = vpack.c.b16 %v944, %v943
  %v1182 = vpack.c.b16 %v946, %v945
  %v1183 = vpack.c.b16 %v948, %v947
  %v1184 = vpack.c.b16 %v950, %v949
  %v1185 = vpack.c.b16 %v952, %v951
  %v1186 = vpack.c.b16 %v954, %v953
  %v1187 = vpack.c.b16 %v956, %v955
  %v1188 = vpack.c.b16 %v958, %v957
  %v1189 = vpack.c.b16 %v960, %v959
  %v1190 = vpack.c.b16 %v962, %v961
  %v1191 = vpack.c.b16 %v964, %v963
  %v1192 = vpack.c.b16 %v966, %v965
  %v1193 = vpack.c.b16 %v968, %v967
  %v1194 = vpack.c.b16 %v970, %v969
  %v1195 = vpack.c.b16 %v972, %v971
  %v1196 = vpack.c.b16 %v974, %v973
  %v1197 = vpack.c.b16 %v976, %v975
  %v1198 = vpack.c.b16 %v978, %v977
  %v1199 = vpack.c.b16 %v980, %v979
  %v1200 = vpack.c.b16 %v982, %v981
  %v1201 = vpack.c.b16 %v984, %v983
  %v1202 = vpack.c.b16 %v986, %v985
  %v1203 = vpack.c.b16 %v988, %v987
  %v1204 = vpack.c.b16 %v990, %v989
  %v1205 = vpack.c.b16 %v992, %v991
  %v1206 = vpack.c.b16 %v994, %v993
  %v1207 = vpack.c.b16 %v996, %v995
  %v1208 = vpack.c.b16 %v998, %v997
  %v1209 = vpack.c.b16 %v1000, %v999
  %v1210 = vpack.c.b16 %v1002, %v1001
  %v1211 = vpack.c.b16 %v1004, %v1003
  %v1212 = vpack.c.b16 %v1006, %v1005
  %v1213 = vpack.c.b16 %v1008, %v1007
  %v1214 = vpack.c.b16 %v1010, %v1009
  %v1215 = vpack.c.b16 %v1012, %v1011
  %v1216 = vpack.c.b16 %v1014, %v1013
  %v1217 = vpack.c.b16 %v1016, %v1015
  %v1218 = vpack.c.b16 %v1018, %v1017
  %v1219 = vpack.c.b16 %v1020, %v1019
  %v1220 = vpack.c.b16 %v1022, %v1021
  %v1221 = vpack.c.b16 %v1024, %v1023
  %v1222 = vpack.c.b16 %v1026, %v1025
  %v1223 = vpack.c.b16 %v1028, %v1027
  %v1224 = vpack.c.b16 %v1030, %v1029
  %v1225 = vpack.c.b16 %v1032, %v1031
  %v1226 = vpack.c.b16 %v1034, %v1033
  %v1227 = vpack.c.b16 %v1036, %v1035
  %v1228 = vpack.c.b16 %v1038, %v1037
  %v1229 = vpack.c.b16 %v1040, %v1039
  %v1230 = vpack.c.b16 %v1042, %v1041
  %v1231 = vpack.c.b16 %v1044, %v1043
  %v1232 = vpack.c.b16 %v1046, %v1045
  %v1233 = vpack.c.b16 %v1048, %v1047
  %v1234 = vpack.c.b16 %v1050, %v1049
  %v1235 = vpack.c.b16 %v1052, %v1051
  %v1236 = vpack.c.b16 %v1054, %v1053
  %v1237 = vpack.c.b16 %v1056, %v1055
  %v1238 = vpack.c.b16 %v1058, %v1057
  %v1239 = vpack.c.b16 %v1060, %v1059
  %v1240 = vpack.c.b16 %v1062, %v1061
  %v1241 = vpack.c.b16 %v1064, %v1063
  %v1242 = vpack.c.b16 %v1066, %v1065
  %v1243 = vpack.c.b16 %v1068, %v1067
  %v1244 = vpack.c.b16 %v1070, %v1069
  %v1245 = vpack.c.b16 %v1072, %v1071
  %v1246 = vpack.c.b16 %v1074, %v1073
  %v1247 = vpack.c.b16 %v1076, %v1075
  %v1248 = vpack.c.b16 %v1078, %v1077
  %v1249 = vpack.c.b16 %v1080, %v1079
  %v1250 = vpack.c.b16 %v1082, %v1081
  %v1251 = vpack.c.b16 %v1084, %v1083
  %v1252 = vpack.c.b16 %v1086, %v1085
  %v1253 = vpack.c.b16 %v1088, %v1087
  %v1254 = vpack.c.b16 %v1090, %v1089
  %v1255 = vpack.c.b16 %v1092, %v1091
  %v1256 = vpack.c.b16 %v1094, %v1093
  %v1257 = vpack.c.b16 %v1096, %v1095
  %v1258 = vpack.c.b16 %v1098, %v1097
  %v1259 = vpack.c.b16 %v1100, %v1099
  %v1260 = vpack.c.b16 %v1102, %v1101
  %v1261 = vpack.c.b16 %v1104, %v1103
  %v1262 = vpack.c.b16 %v1106, %v1105
  %v1263 = vpack.c.b16 %v1108, %v1107
  %v1264 = vpack.c.b16 %v1110, %v1109
  %v1265 = vpack.c.b16 %v1112, %v1111
  %v1266 = vpack.c.b16 %v1114, %v1113
  %v1267 = vpack.c.b16 %v1116, %v1115
  %v1268 = vpack.c.b16 %v1118, %v1117
  %v1269 = vpack.c.b16 %v1120, %v1119
  %v1270 = vpack.c.b16 %v1122, %v1121
  %v1271 = vpack.c.b16 %v1124, %v1123
  %v1272 = vpack.c.b16 %v1126, %v1125
  %v1273 = vpack.c.b16 %v1128, %v1127
  %v1274 = vpack.c.b16 %v1130, %v1129
  %v1275 = vpack.c.b16 %v1132, %v1131
  %v1276 = vpack.c.b16 %v1134, %v1133
  %v1277 = vpack.c.b16 %v1136, %v1135
  %v1278 = vpack.c.b16 %v1138, %v1137
  %v1279 = vpack.c.b16 %v1140, %v1139
  %v1280 = vpack.c.b16 %v1142, %v1141
  %v1281 = vpack.c.b16 %v1144, %v1143
  %v1282 = vpack.c.b16 %v1146, %v1145
  %v1283 = vpack.c.b16 %v1148, %v1147
  %v1284 = vpack.c.b16 %v1150, %v1149
  %v1285 = vpack.c.b16 %v1152, %v1151
  %v1286 = vpack.c.b16 %v1154, %v1153
  %v1287 = vpack.c.b16 %v1156, %v1155
  %v1288 = vpack.c.b16 %v1158, %v1157
  %v1289 = vpack.c.b16 %v1160, %v1159
  %v1290 = vpack.c.b16 %v1162, %v1161
  %1419 = vmatpush.bf16.msra.mxu0 %v1170
  %1420 = vmatpush.bf16.msra.mxu0 %v1169
  %1421 = vmatpush.bf16.msra.mxu0 %v1168
  %1422 = vmatpush.bf16.msra.mxu0 %v1167
  %1423 = vmatpush.bf16.msra.mxu0 %v1166
  %1424 = vmatpush.bf16.msra.mxu0 %v1165
  %1425 = vmatpush.bf16.msra.mxu0 %v1164
  %1426 = vmatpush.bf16.msra.mxu0 %v1163
  %1427 = vmatmul.bf16.gmra.mxu0 %v279
  %v1428 = vpop.f32.mrf.mxu0
  %v1429 = vadd.f32 %v649, %v1428
  %v1430 = vpop.f32.mrf.mxu0
  %v1431 = vadd.f32 %v649, %v1430
  %1432 = vmatmul.bf16.gmra.mxu0 %v287
  %v1433 = vpop.f32.mrf.mxu0
  %v1434 = vadd.f32 %v649, %v1433
  %v1435 = vpop.f32.mrf.mxu0
  %v1436 = vadd.f32 %v649, %v1435
  %1437 = vdwg.mxu0
  %1438 = vmatpush.bf16.msra.mxu0 %v1178
  %1439 = vmatpush.bf16.msra.mxu0 %v1177
  %1440 = vmatpush.bf16.msra.mxu0 %v1176
  %1441 = vmatpush.bf16.msra.mxu0 %v1175
  %1442 = vmatpush.bf16.msra.mxu0 %v1174
  %1443 = vmatpush.bf16.msra.mxu0 %v1173
  %1444 = vmatpush.bf16.msra.mxu0 %v1172
  %1445 = vmatpush.bf16.msra.mxu0 %v1171
  %1446 = vmatmul.bf16.gmra.mxu0 %v280
  %v1447 = vpop.f32.mrf.mxu0
  %v1448 = vadd.f32 %v1429, %v1447
  %v1449 = vpop.f32.mrf.mxu0
  %v1450 = vadd.f32 %v1431, %v1449
  %1451 = vmatmul.bf16.gmra.mxu0 %v288
  %v1452 = vpop.f32.mrf.mxu0
  %v1453 = vadd.f32 %v1434, %v1452
  %v1454 = vpop.f32.mrf.mxu0
  %v1455 = vadd.f32 %v1436, %v1454
  %1456 = vdwg.mxu0
  %1457 = vmatpush.bf16.msra.mxu0 %v1186
  %1458 = vmatpush.bf16.msra.mxu0 %v1185
  %1459 = vmatpush.bf16.msra.mxu0 %v1184
  %1460 = vmatpush.bf16.msra.mxu0 %v1183
  %1461 = vmatpush.bf16.msra.mxu0 %v1182
  %1462 = vmatpush.bf16.msra.mxu0 %v1181
  %1463 = vmatpush.bf16.msra.mxu0 %v1180
  %1464 = vmatpush.bf16.msra.mxu0 %v1179
  %1465 = vmatmul.bf16.gmra.mxu0 %v281
  %v1466 = vpop.f32.mrf.mxu0
  %v1467 = vadd.f32 %v1448, %v1466
  %v1468 = vpop.f32.mrf.mxu0
  %v1469 = vadd.f32 %v1450, %v1468
  %1470 = vmatmul.bf16.gmra.mxu0 %v289
  %v1471 = vpop.f32.mrf.mxu0
  %v1472 = vadd.f32 %v1453, %v1471
  %v1473 = vpop.f32.mrf.mxu0
  %v1474 = vadd.f32 %v1455, %v1473
  %1475 = vdwg.mxu0
  %1476 = vmatpush.bf16.msra.mxu0 %v1194
  %1477 = vmatpush.bf16.msra.mxu0 %v1193
  %1478 = vmatpush.bf16.msra.mxu0 %v1192
  %1479 = vmatpush.bf16.msra.mxu0 %v1191
  %1480 = vmatpush.bf16.msra.mxu0 %v1190
  %1481 = vmatpush.bf16.msra.mxu0 %v1189
  %1482 = vmatpush.bf16.msra.mxu0 %v1188
  %1483 = vmatpush.bf16.msra.mxu0 %v1187
  %1484 = vmatmul.bf16.gmra.mxu0 %v282
  %v1485 = vpop.f32.mrf.mxu0
  %v1486 = vadd.f32 %v1467, %v1485
  %v1487 = vpop.f32.mrf.mxu0
  %v1488 = vadd.f32 %v1469, %v1487
  %1489 = vmatmul.bf16.gmra.mxu0 %v290
  %v1490 = vpop.f32.mrf.mxu0
  %v1491 = vadd.f32 %v1472, %v1490
  %v1492 = vpop.f32.mrf.mxu0
  %v1493 = vadd.f32 %v1474, %v1492
  %1494 = vdwg.mxu0
  %1495 = vmatpush.bf16.msra.mxu0 %v1202
  %1496 = vmatpush.bf16.msra.mxu0 %v1201
  %1497 = vmatpush.bf16.msra.mxu0 %v1200
  %1498 = vmatpush.bf16.msra.mxu0 %v1199
  %1499 = vmatpush.bf16.msra.mxu0 %v1198
  %1500 = vmatpush.bf16.msra.mxu0 %v1197
  %1501 = vmatpush.bf16.msra.mxu0 %v1196
  %1502 = vmatpush.bf16.msra.mxu0 %v1195
  %1503 = vmatmul.bf16.gmra.mxu0 %v283
  %v1504 = vpop.f32.mrf.mxu0
  %v1505 = vadd.f32 %v1486, %v1504
  %v1506 = vpop.f32.mrf.mxu0
  %v1507 = vadd.f32 %v1488, %v1506
  %1508 = vmatmul.bf16.gmra.mxu0 %v291
  %v1509 = vpop.f32.mrf.mxu0
  %v1510 = vadd.f32 %v1491, %v1509
  %v1511 = vpop.f32.mrf.mxu0
  %v1512 = vadd.f32 %v1493, %v1511
  %1513 = vdwg.mxu0
  %1514 = vmatpush.bf16.msra.mxu0 %v1210
  %1515 = vmatpush.bf16.msra.mxu0 %v1209
  %1516 = vmatpush.bf16.msra.mxu0 %v1208
  %1517 = vmatpush.bf16.msra.mxu0 %v1207
  %1518 = vmatpush.bf16.msra.mxu0 %v1206
  %1519 = vmatpush.bf16.msra.mxu0 %v1205
  %1520 = vmatpush.bf16.msra.mxu0 %v1204
  %1521 = vmatpush.bf16.msra.mxu0 %v1203
  %1522 = vmatmul.bf16.gmra.mxu0 %v284
  %v1523 = vpop.f32.mrf.mxu0
  %v1524 = vadd.f32 %v1505, %v1523
  %v1525 = vpop.f32.mrf.mxu0
  %v1526 = vadd.f32 %v1507, %v1525
  %1527 = vmatmul.bf16.gmra.mxu0 %v292
  %v1528 = vpop.f32.mrf.mxu0
  %v1529 = vadd.f32 %v1510, %v1528
  %v1530 = vpop.f32.mrf.mxu0
  %v1531 = vadd.f32 %v1512, %v1530
  %1532 = vdwg.mxu0
  %1533 = vmatpush.bf16.msra.mxu0 %v1218
  %1534 = vmatpush.bf16.msra.mxu0 %v1217
  %1535 = vmatpush.bf16.msra.mxu0 %v1216
  %1536 = vmatpush.bf16.msra.mxu0 %v1215
  %1537 = vmatpush.bf16.msra.mxu0 %v1214
  %1538 = vmatpush.bf16.msra.mxu0 %v1213
  %1539 = vmatpush.bf16.msra.mxu0 %v1212
  %1540 = vmatpush.bf16.msra.mxu0 %v1211
  %1541 = vmatmul.bf16.gmra.mxu0 %v285
  %v1542 = vpop.f32.mrf.mxu0
  %v1543 = vadd.f32 %v1524, %v1542
  %v1544 = vpop.f32.mrf.mxu0
  %v1545 = vadd.f32 %v1526, %v1544
  %1546 = vmatmul.bf16.gmra.mxu0 %v293
  %v1547 = vpop.f32.mrf.mxu0
  %v1548 = vadd.f32 %v1529, %v1547
  %v1549 = vpop.f32.mrf.mxu0
  %v1550 = vadd.f32 %v1531, %v1549
  %1551 = vdwg.mxu0
  %1552 = vmatpush.bf16.msra.mxu0 %v1226
  %1553 = vmatpush.bf16.msra.mxu0 %v1225
  %1554 = vmatpush.bf16.msra.mxu0 %v1224
  %1555 = vmatpush.bf16.msra.mxu0 %v1223
  %1556 = vmatpush.bf16.msra.mxu0 %v1222
  %1557 = vmatpush.bf16.msra.mxu0 %v1221
  %1558 = vmatpush.bf16.msra.mxu0 %v1220
  %1559 = vmatpush.bf16.msra.mxu0 %v1219
  %1560 = vmatmul.bf16.gmra.mxu0 %v286
  %v1561 = vpop.f32.mrf.mxu0
  %v1562 = vadd.f32 %v1543, %v1561
  %v1563 = vpop.f32.mrf.mxu0
  %v1564 = vadd.f32 %v1545, %v1563
  %1565 = vmatmul.bf16.gmra.mxu0 %v294
  %v1566 = vpop.f32.mrf.mxu0
  %v1567 = vadd.f32 %v1548, %v1566
  %v1568 = vpop.f32.mrf.mxu0
  %v1569 = vadd.f32 %v1550, %v1568
  %1570 = vdwg.mxu0
  %1571 = vmatpush.bf16.msra.mxu0 %v1234
  %1572 = vmatpush.bf16.msra.mxu0 %v1233
  %1573 = vmatpush.bf16.msra.mxu0 %v1232
  %1574 = vmatpush.bf16.msra.mxu0 %v1231
  %1575 = vmatpush.bf16.msra.mxu0 %v1230
  %1576 = vmatpush.bf16.msra.mxu0 %v1229
  %1577 = vmatpush.bf16.msra.mxu0 %v1228
  %1578 = vmatpush.bf16.msra.mxu0 %v1227
  %1579 = vmatmul.bf16.gmra.mxu0 %v359
  %v1580 = vpop.f32.mrf.mxu0
  %v1581 = vadd.f32 %v1562, %v1580
  %v1582 = vpop.f32.mrf.mxu0
  %v1583 = vadd.f32 %v1564, %v1582
  %1584 = vmatmul.bf16.gmra.mxu0 %v367
  %v1585 = vpop.f32.mrf.mxu0
  %v1586 = vadd.f32 %v1567, %v1585
  %v1587 = vpop.f32.mrf.mxu0
  %v1588 = vadd.f32 %v1569, %v1587
  %1589 = vdwg.mxu0
  %1590 = vmatpush.bf16.msra.mxu0 %v1242
  %1591 = vmatpush.bf16.msra.mxu0 %v1241
  %1592 = vmatpush.bf16.msra.mxu0 %v1240
  %1593 = vmatpush.bf16.msra.mxu0 %v1239
  %1594 = vmatpush.bf16.msra.mxu0 %v1238
  %1595 = vmatpush.bf16.msra.mxu0 %v1237
  %1596 = vmatpush.bf16.msra.mxu0 %v1236
  %1597 = vmatpush.bf16.msra.mxu0 %v1235
  %1598 = vmatmul.bf16.gmra.mxu0 %v360
  %v1599 = vpop.f32.mrf.mxu0
  %v1600 = vadd.f32 %v1581, %v1599
  %v1601 = vpop.f32.mrf.mxu0
  %v1602 = vadd.f32 %v1583, %v1601
  %1603 = vmatmul.bf16.gmra.mxu0 %v368
  %v1604 = vpop.f32.mrf.mxu0
  %v1605 = vadd.f32 %v1586, %v1604
  %v1606 = vpop.f32.mrf.mxu0
  %v1607 = vadd.f32 %v1588, %v1606
  %1608 = vdwg.mxu0
  %1609 = vmatpush.bf16.msra.mxu0 %v1250
  %1610 = vmatpush.bf16.msra.mxu0 %v1249
  %1611 = vmatpush.bf16.msra.mxu0 %v1248
  %1612 = vmatpush.bf16.msra.mxu0 %v1247
  %1613 = vmatpush.bf16.msra.mxu0 %v1246
  %1614 = vmatpush.bf16.msra.mxu0 %v1245
  %1615 = vmatpush.bf16.msra.mxu0 %v1244
  %1616 = vmatpush.bf16.msra.mxu0 %v1243
  %1617 = vmatmul.bf16.gmra.mxu0 %v361
  %v1618 = vpop.f32.mrf.mxu0
  %v1619 = vadd.f32 %v1600, %v1618
  %v1620 = vpop.f32.mrf.mxu0
  %v1621 = vadd.f32 %v1602, %v1620
  %1622 = vmatmul.bf16.gmra.mxu0 %v369
  %v1623 = vpop.f32.mrf.mxu0
  %v1624 = vadd.f32 %v1605, %v1623
  %v1625 = vpop.f32.mrf.mxu0
  %v1626 = vadd.f32 %v1607, %v1625
  %1627 = vdwg.mxu0
  %1628 = vmatpush.bf16.msra.mxu0 %v1258
  %1629 = vmatpush.bf16.msra.mxu0 %v1257
  %1630 = vmatpush.bf16.msra.mxu0 %v1256
  %1631 = vmatpush.bf16.msra.mxu0 %v1255
  %1632 = vmatpush.bf16.msra.mxu0 %v1254
  %1633 = vmatpush.bf16.msra.mxu0 %v1253
  %1634 = vmatpush.bf16.msra.mxu0 %v1252
  %1635 = vmatpush.bf16.msra.mxu0 %v1251
  %1636 = vmatmul.bf16.gmra.mxu0 %v362
  %v1637 = vpop.f32.mrf.mxu0
  %v1638 = vadd.f32 %v1619, %v1637
  %v1639 = vpop.f32.mrf.mxu0
  %v1640 = vadd.f32 %v1621, %v1639
  %1641 = vmatmul.bf16.gmra.mxu0 %v370
  %v1642 = vpop.f32.mrf.mxu0
  %v1643 = vadd.f32 %v1624, %v1642
  %v1644 = vpop.f32.mrf.mxu0
  %v1645 = vadd.f32 %v1626, %v1644
  %1646 = vdwg.mxu0
  %1647 = vmatpush.bf16.msra.mxu0 %v1266
  %1648 = vmatpush.bf16.msra.mxu0 %v1265
  %1649 = vmatpush.bf16.msra.mxu0 %v1264
  %1650 = vmatpush.bf16.msra.mxu0 %v1263
  %1651 = vmatpush.bf16.msra.mxu0 %v1262
  %1652 = vmatpush.bf16.msra.mxu0 %v1261
  %1653 = vmatpush.bf16.msra.mxu0 %v1260
  %1654 = vmatpush.bf16.msra.mxu0 %v1259
  %1655 = vmatmul.bf16.gmra.mxu0 %v363
  %v1656 = vpop.f32.mrf.mxu0
  %v1657 = vadd.f32 %v1638, %v1656
  %v1658 = vpop.f32.mrf.mxu0
  %v1659 = vadd.f32 %v1640, %v1658
  %1660 = vmatmul.bf16.gmra.mxu0 %v371
  %v1661 = vpop.f32.mrf.mxu0
  %v1662 = vadd.f32 %v1643, %v1661
  %v1663 = vpop.f32.mrf.mxu0
  %v1664 = vadd.f32 %v1645, %v1663
  %1665 = vdwg.mxu0
  %1666 = vmatpush.bf16.msra.mxu0 %v1274
  %1667 = vmatpush.bf16.msra.mxu0 %v1273
  %1668 = vmatpush.bf16.msra.mxu0 %v1272
  %1669 = vmatpush.bf16.msra.mxu0 %v1271
  %1670 = vmatpush.bf16.msra.mxu0 %v1270
  %1671 = vmatpush.bf16.msra.mxu0 %v1269
  %1672 = vmatpush.bf16.msra.mxu0 %v1268
  %1673 = vmatpush.bf16.msra.mxu0 %v1267
  %1674 = vmatmul.bf16.gmra.mxu0 %v364
  %v1675 = vpop.f32.mrf.mxu0
  %v1676 = vadd.f32 %v1657, %v1675
  %v1677 = vpop.f32.mrf.mxu0
  %v1678 = vadd.f32 %v1659, %v1677
  %1679 = vmatmul.bf16.gmra.mxu0 %v372
  %v1680 = vpop.f32.mrf.mxu0
  %v1681 = vadd.f32 %v1662, %v1680
  %v1682 = vpop.f32.mrf.mxu0
  %v1683 = vadd.f32 %v1664, %v1682
  %1684 = vdwg.mxu0
  %1685 = vmatpush.bf16.msra.mxu0 %v1282
  %1686 = vmatpush.bf16.msra.mxu0 %v1281
  %1687 = vmatpush.bf16.msra.mxu0 %v1280
  %1688 = vmatpush.bf16.msra.mxu0 %v1279
  %1689 = vmatpush.bf16.msra.mxu0 %v1278
  %1690 = vmatpush.bf16.msra.mxu0 %v1277
  %1691 = vmatpush.bf16.msra.mxu0 %v1276
  %1692 = vmatpush.bf16.msra.mxu0 %v1275
  %1693 = vmatmul.bf16.gmra.mxu0 %v365
  %v1694 = vpop.f32.mrf.mxu0
  %v1695 = vadd.f32 %v1676, %v1694
  %v1696 = vpop.f32.mrf.mxu0
  %v1697 = vadd.f32 %v1678, %v1696
  %1698 = vmatmul.bf16.gmra.mxu0 %v373
  %v1699 = vpop.f32.mrf.mxu0
  %v1700 = vadd.f32 %v1681, %v1699
  %v1701 = vpop.f32.mrf.mxu0
  %v1702 = vadd.f32 %v1683, %v1701
  %1703 = vdwg.mxu0
  %1704 = vmatpush.bf16.msra.mxu0 %v1290
  %1705 = vmatpush.bf16.msra.mxu0 %v1289
  %1706 = vmatpush.bf16.msra.mxu0 %v1288
  %1707 = vmatpush.bf16.msra.mxu0 %v1287
  %1708 = vmatpush.bf16.msra.mxu0 %v1286
  %1709 = vmatpush.bf16.msra.mxu0 %v1285
  %1710 = vmatpush.bf16.msra.mxu0 %v1284
  %1711 = vmatpush.bf16.msra.mxu0 %v1283
  %1712 = vmatmul.bf16.gmra.mxu0 %v366
  %v1713 = vpop.f32.mrf.mxu0
  %v1714 = vadd.f32 %v1695, %v1713
  %v1715 = vpop.f32.mrf.mxu0
  %v1716 = vadd.f32 %v1697, %v1715
  %1717 = vmatmul.bf16.gmra.mxu0 %v374
  %v1718 = vpop.f32.mrf.mxu0
  %v1719 = vadd.f32 %v1700, %v1718
  %v1720 = vpop.f32.mrf.mxu0
  %v1721 = vadd.f32 %v1702, %v1720
  %1722 = vdwg.mxu0
  %v1723 = vlaneseq
  %v1724 = vand.u32 %v1723, 127
  %vm1725 = vcmp.lt.s32.totalorder %v1724, 9
  %v1726 = vsel %vm1725, %v1714, 0.0
  %v1727 = vsel %vm1725, %v1716, 0.0
  %v1728 = vsel %vm1725, %v1719, 0.0
  %v1729 = vsel %vm1725, %v1721, 0.0
  %v1730 = vpack.c.bf16 %v1727, %v1726
  %v1731 = vpack.c.bf16 %v1729, %v1728
  %v1732 = vld [vmem:[%s3] sm:$0xf]
  %v1733 = vld [vmem:[%s3 + $0x4] sm:$0xf]
  %v1734 = vld [vmem:[%s3 + $0x8] sm:$0xf]
  %v1735 = vld [vmem:[%s3 + $0xc] sm:$0xf]
  %v1740 = vunpack.c.l.b16 %v1732
  %v1741 = vunpack.c.l.b16 %v1733
  %v1742 = vunpack.c.l.b16 %v1734
  %v1743 = vunpack.c.l.b16 %v1735
  %v1744 = vpack.c.b16 %v1741, %v1740
  %v1745 = vpack.c.b16 %v1743, %v1742
  %vm1746 = vcmask 261120
  %v1748 = vsel %vm1746, %v1744, 0
  %v1751 = vsel %vm1746, %v1745, 0
  %1753 = vmatpush.bf16.msra.mxu0 0
  %1754 = vmatpush.bf16.msra.mxu0 0
  %1755 = vmatpush.bf16.msra.mxu0 0
  %1756 = vmatpush.bf16.msra.mxu0 0
  %1757 = vmatpush.bf16.msra.mxu0 0
  %1758 = vmatpush.bf16.msra.mxu0 0
  %1759 = vmatpush.bf16.msra.mxu0 %v1731
  %1760 = vmatpush.bf16.msra.mxu0 %v1730
  %1761 = vmatmul.bf16.gmra.mxu0 %v1748
  %v1762 = vpop.f32.mrf.mxu0
  %v1763 = vadd.f32 0.0, %v1762
  %v1764 = vpop.f32.mrf.mxu0
  %v1765 = vadd.f32 0.0, %v1764
  %1766 = vmatmul.bf16.gmra.mxu0 %v1751
  %v1767 = vpop.f32.mrf.mxu0
  %v1768 = vadd.f32 0.0, %v1767
  %v1769 = vpop.f32.mrf.mxu0
  %v1770 = vadd.f32 0.0, %v1769
  %1771 = vdwg.mxu0
  %v1772 = vld [vmem:[%s4] sm:$0xff]
  %v1773 = vld [vmem:[%s4 + $0x8] sm:$0xff]
  %v1774 = vld [vmem:[%s4 + $0x10] sm:$0xff]
  %v1775 = vld [vmem:[%s4 + $0x18] sm:$0xff]
  %vm1776 = vcmp.ne.f32.partialorder %v1772, -100.0
  %vm1777 = vcmp.ne.f32.partialorder %v1773, -100.0
  %vm1778 = vcmp.ne.f32.partialorder %v1774, -100.0
  %vm1779 = vcmp.ne.f32.partialorder %v1775, -100.0
  %vm1780 = vmand %vm1725, %vm1776
  %vm1781 = vmand %vm1725, %vm1777
  %vm1782 = vmand %vm1725, %vm1778
  %vm1783 = vmand %vm1725, %vm1779
  %v1784 = vsub.f32 %v1763, %v1772
  %v1785 = vsub.f32 %v1765, %v1773
  %v1786 = vsub.f32 %v1768, %v1774
  %v1787 = vsub.f32 %v1770, %v1775
  %v1788 = vsel %vm1780, %v1784, 0.0
  %v1789 = vsel %vm1781, %v1785, 0.0
  %v1790 = vsel %vm1782, %v1786, 0.0
  %v1791 = vsel %vm1783, %v1787, 0.0
  %v1792 = vmul.f32 %v1788, %v1788
  %v1793 = vmul.f32 %v1789, %v1789
  %v1794 = vmul.f32 %v1790, %v1790
  %v1795 = vmul.f32 %v1791, %v1791
  %v1796 = vadd.f32 %v1792, %v1793
  %v1797 = vadd.f32 %v1796, %v1794
  %v1798 = vadd.f32 %v1797, %v1795
  %1799 = vadd.xlane.f32.xlu0 %v1798
  %v1800 = vpop.xlane.xlu0 %1799
  %v1801 = vrot.slane %v1800, 4
  %v1802 = vadd.f32 %v1800, %v1801
  %v1803 = vrot.slane %v1802, 2
  %v1804 = vadd.f32 %v1802, %v1803
  %v1805 = vrot.slane %v1804, 1
  %v1806 = vadd.f32 %v1804, %v1805
  %s1807 = vtos %v1806
  %v1808 = vsel %vm1780, 1, 0
  %v1809 = vsel %vm1781, 1, 0
  %v1810 = vsel %vm1782, 1, 0
  %v1811 = vsel %vm1783, 1, 0
  %v1812 = vcvt.s32.f32 %v1808
  %v1813 = vcvt.s32.f32 %v1809
  %v1814 = vcvt.s32.f32 %v1810
  %v1815 = vcvt.s32.f32 %v1811
  %v1816 = vadd.f32 %v1812, %v1813
  %v1817 = vadd.f32 %v1816, %v1814
  %v1818 = vadd.f32 %v1817, %v1815
  %1819 = vadd.xlane.f32.xlu0 %v1818
  %v1820 = vpop.xlane.xlu0 %1819
  %v1821 = vrot.slane %v1820, 4
  %v1822 = vadd.f32 %v1820, %v1821
  %v1823 = vrot.slane %v1822, 2
  %v1824 = vadd.f32 %v1822, %v1823
  %v1825 = vrot.slane %v1824, 1
  %v1826 = vadd.f32 %v1824, %v1825
  %s1827 = vtos %v1826
  %vm1828 = vcmp.ge.s32.totalorder %v1724, 9
  %vm1829 = vcmp.lt.s32.totalorder %v1724, 55
  %vm1830 = vmand %vm1828, %vm1829
  %v1831 = vsel %vm1830, %v1714, -1e+30
  %v1832 = vsel %vm1830, %v1716, -1e+30
  %v1833 = vsel %vm1830, %v1719, -1e+30
  %v1834 = vsel %vm1830, %v1721, -1e+30
  %vm1835 = vcmp.eq.s32.totalorder %v1724, 127
  %v1836 = vsel %vm1835, %v1772, 0.0
  %v1837 = vsel %vm1835, %v1773, 0.0
  %v1838 = vsel %vm1835, %v1774, 0.0
  %v1839 = vsel %vm1835, %v1775, 0.0
  %1840 = vadd.xlane.f32.xlu0 %v1836
  %v1841 = vpop.xlane.xlu0 %1840
  %1842 = vadd.xlane.f32.xlu0 %v1837
  %v1843 = vpop.xlane.xlu0 %1842
  %1844 = vadd.xlane.f32.xlu0 %v1838
  %v1845 = vpop.xlane.xlu0 %1844
  %1846 = vadd.xlane.f32.xlu0 %v1839
  %v1847 = vpop.xlane.xlu0 %1846
  %v1848 = vcvt.f32.s32.to.zero.pseudo %v1841
  %v1849 = vcvt.f32.s32.to.zero.pseudo %v1843
  %v1850 = vcvt.f32.s32.to.zero.pseudo %v1845
  %v1851 = vcvt.f32.s32.to.zero.pseudo %v1847
  %vm1852 = vcmp.ne.s32.totalorder %v1848, 0
  %vm1853 = vcmp.ne.s32.totalorder %v1849, 0
  %vm1854 = vcmp.ne.s32.totalorder %v1850, 0
  %vm1855 = vcmp.ne.s32.totalorder %v1851, 0
  %1856 = vmax.xlane.f32.xlu0 %v1831
  %v1857 = vpop.xlane.xlu0 %1856
  %1858 = vmax.xlane.f32.xlu0 %v1832
  %v1859 = vpop.xlane.xlu0 %1858
  %1860 = vmax.xlane.f32.xlu0 %v1833
  %v1861 = vpop.xlane.xlu0 %1860
  %1862 = vmax.xlane.f32.xlu0 %v1834
  %v1863 = vpop.xlane.xlu0 %1862
  %v1864 = vsub.f32 %v1831, %v1857
  %v1865 = vsub.f32 %v1832, %v1859
  %v1866 = vsub.f32 %v1833, %v1861
  %v1867 = vsub.f32 %v1834, %v1863
  %v1868 = vmul.f32 %v1864, 1.442695
  %v1869 = vpow.pop %v1868
  %v1870 = vmul.f32 %v1865, 1.442695
  %v1871 = vpow.pop %v1870
  %v1872 = vmul.f32 %v1866, 1.442695
  %v1873 = vpow.pop %v1872
  %v1874 = vmul.f32 %v1867, 1.442695
  %v1875 = vpow.pop %v1874
  %1876 = vadd.xlane.f32.xlu0 %v1869
  %v1877 = vpop.xlane.xlu0 %1876
  %1878 = vadd.xlane.f32.xlu0 %v1871
  %v1879 = vpop.xlane.xlu0 %1878
  %1880 = vadd.xlane.f32.xlu0 %v1873
  %v1881 = vpop.xlane.xlu0 %1880
  %1882 = vadd.xlane.f32.xlu0 %v1875
  %v1883 = vpop.xlane.xlu0 %1882
  %v1884 = vlog2.pop %v1877
  %v1885 = vmul.f32 %v1884, 0.6931472
  %v1886 = vlog2.pop %v1879
  %v1887 = vmul.f32 %v1886, 0.6931472
  %v1888 = vlog2.pop %v1881
  %v1889 = vmul.f32 %v1888, 0.6931472
  %v1890 = vlog2.pop %v1883
  %v1891 = vmul.f32 %v1890, 0.6931472
  %v1892 = vadd.f32 %v1857, %v1885
  %v1893 = vadd.f32 %v1859, %v1887
  %v1894 = vadd.f32 %v1861, %v1889
  %v1895 = vadd.f32 %v1863, %v1891
  %v1896 = vsub.s32 %v1724, 9
  %vm1897 = vcmp.eq.s32.totalorder %v1896, %v1848
  %vm1898 = vcmp.eq.s32.totalorder %v1896, %v1849
  %vm1899 = vcmp.eq.s32.totalorder %v1896, %v1850
  %vm1900 = vcmp.eq.s32.totalorder %v1896, %v1851
  %v1901 = vsel %vm1897, %v1714, 0.0
  %v1902 = vsel %vm1898, %v1716, 0.0
  %v1903 = vsel %vm1899, %v1719, 0.0
  %v1904 = vsel %vm1900, %v1721, 0.0
  %1905 = vadd.xlane.f32.xlu0 %v1901
  %v1906 = vpop.xlane.xlu0 %1905
  %1907 = vadd.xlane.f32.xlu0 %v1902
  %v1908 = vpop.xlane.xlu0 %1907
  %1909 = vadd.xlane.f32.xlu0 %v1903
  %v1910 = vpop.xlane.xlu0 %1909
  %1911 = vadd.xlane.f32.xlu0 %v1904
  %v1912 = vpop.xlane.xlu0 %1911
  %v1913 = vsub.f32 %v1892, %v1906
  %v1914 = vsub.f32 %v1893, %v1908
  %v1915 = vsub.f32 %v1894, %v1910
  %v1916 = vsub.f32 %v1895, %v1912
  %v1917 = vsel %vm1852, %v1913, 0.0
  %v1918 = vsel %vm1853, %v1914, 0.0
  %v1919 = vsel %vm1854, %v1915, 0.0
  %v1920 = vsel %vm1855, %v1916, 0.0
  %vm1921 = vcmask 7168
  %v1922 = vsel %vm1921, %v1917, 0.0
  %v1923 = vsel %vm1921, %v1918, 0.0
  %v1924 = vadd.f32 %v1922, %v1923
  %v1925 = vsel %vm1921, %v1919, 0.0
  %v1926 = vadd.f32 %v1924, %v1925
  %v1927 = vsel %vm1921, %v1920, 0.0
  %v1928 = vadd.f32 %v1926, %v1927
  %1929 = vadd.xlane.f32.xlu0 %v1928
  %v1930 = vpop.xlane.xlu0 %1929
  %v1931 = vrot.slane %v1930, 4
  %v1932 = vadd.f32 %v1930, %v1931
  %v1933 = vrot.slane %v1932, 2
  %v1934 = vadd.f32 %v1932, %v1933
  %v1935 = vrot.slane %v1934, 1
  %v1936 = vadd.f32 %v1934, %v1935
  %s1937 = vtos %v1936
  %v1938 = vsel %vm1852, 1, 0
  %v1939 = vsel %vm1853, 1, 0
  %v1940 = vsel %vm1854, 1, 0
  %v1941 = vsel %vm1855, 1, 0
  %v1942 = vcvt.s32.f32 %v1938
  %v1943 = vcvt.s32.f32 %v1939
  %v1944 = vcvt.s32.f32 %v1940
  %v1945 = vcvt.s32.f32 %v1941
  %v1946 = vsel %vm1921, %v1942, 0.0
  %v1947 = vsel %vm1921, %v1943, 0.0
  %v1948 = vadd.f32 %v1946, %v1947
  %v1949 = vsel %vm1921, %v1944, 0.0
  %v1950 = vadd.f32 %v1948, %v1949
  %v1951 = vsel %vm1921, %v1945, 0.0
  %v1952 = vadd.f32 %v1950, %v1951
  %1953 = vadd.xlane.f32.xlu0 %v1952
  %v1954 = vpop.xlane.xlu0 %1953
  %v1955 = vrot.slane %v1954, 4
  %v1956 = vadd.f32 %v1954, %v1955
  %v1957 = vrot.slane %v1956, 2
  %v1958 = vadd.f32 %v1956, %v1957
  %v1959 = vrot.slane %v1958, 1
  %v1960 = vadd.f32 %v1958, %v1959
  %s1961 = vtos %v1960
  %vm1962 = vcmp.eq.f32.partialorder %v1831, %v1857
  %vm1963 = vcmp.eq.f32.partialorder %v1832, %v1859
  %vm1964 = vcmp.eq.f32.partialorder %v1833, %v1861
  %vm1965 = vcmp.eq.f32.partialorder %v1834, %v1863
  %v1966 = vsel %vm1962, %v1896, 1073741824
  %v1967 = vsel %vm1963, %v1896, 1073741824
  %v1968 = vsel %vm1964, %v1896, 1073741824
  %v1969 = vsel %vm1965, %v1896, 1073741824
  %v1970 = vand.u32 %v1966, 65535
  %v1971 = vshra.s32 %v1966, 16
  %v1972 = vcvt.s32.f32 %v1970
  %v1973 = vcvt.s32.f32 %v1971
  %1974 = vmin.xlane.f32.xlu0 %v1973
  %v1975 = vpop.xlane.xlu0 %1974
  %vm1976 = vcmp.eq.f32.partialorder %v1973, %v1975
  %v1977 = vsel %vm1976, %v1972, inf
  %1978 = vmin.xlane.f32.xlu0 %v1977
  %v1979 = vpop.xlane.xlu0 %1978
  %v1980 = vcvt.f32.s32 %v1979
  %v1981 = vcvt.f32.s32 %v1975
  %v1982 = vshll.u32 %v1981, 16
  %v1983 = vadd.s32 %v1982, %v1980
  %v1984 = vand.u32 %v1967, 65535
  %v1985 = vshra.s32 %v1967, 16
  %v1986 = vcvt.s32.f32 %v1984
  %v1987 = vcvt.s32.f32 %v1985
  %1988 = vmin.xlane.f32.xlu0 %v1987
  %v1989 = vpop.xlane.xlu0 %1988
  %vm1990 = vcmp.eq.f32.partialorder %v1987, %v1989
  %v1991 = vsel %vm1990, %v1986, inf
  %1992 = vmin.xlane.f32.xlu0 %v1991
  %v1993 = vpop.xlane.xlu0 %1992
  %v1994 = vcvt.f32.s32 %v1993
  %v1995 = vcvt.f32.s32 %v1989
  %v1996 = vshll.u32 %v1995, 16
  %v1997 = vadd.s32 %v1996, %v1994
  %v1998 = vand.u32 %v1968, 65535
  %v1999 = vshra.s32 %v1968, 16
  %v2000 = vcvt.s32.f32 %v1998
  %v2001 = vcvt.s32.f32 %v1999
  %2002 = vmin.xlane.f32.xlu0 %v2001
  %v2003 = vpop.xlane.xlu0 %2002
  %vm2004 = vcmp.eq.f32.partialorder %v2001, %v2003
  %v2005 = vsel %vm2004, %v2000, inf
  %2006 = vmin.xlane.f32.xlu0 %v2005
  %v2007 = vpop.xlane.xlu0 %2006
  %v2008 = vcvt.f32.s32 %v2007
  %v2009 = vcvt.f32.s32 %v2003
  %v2010 = vshll.u32 %v2009, 16
  %v2011 = vadd.s32 %v2010, %v2008
  %v2012 = vand.u32 %v1969, 65535
  %v2013 = vshra.s32 %v1969, 16
  %v2014 = vcvt.s32.f32 %v2012
  %v2015 = vcvt.s32.f32 %v2013
  %2016 = vmin.xlane.f32.xlu0 %v2015
  %v2017 = vpop.xlane.xlu0 %2016
  %vm2018 = vcmp.eq.f32.partialorder %v2015, %v2017
  %v2019 = vsel %vm2018, %v2014, inf
  %2020 = vmin.xlane.f32.xlu0 %v2019
  %v2021 = vpop.xlane.xlu0 %2020
  %v2022 = vcvt.f32.s32 %v2021
  %v2023 = vcvt.f32.s32 %v2017
  %v2024 = vshll.u32 %v2023, 16
  %v2025 = vadd.s32 %v2024, %v2022
  %v2026 = vcvt.s32.f32 %v1983
  %v2027 = vcvt.s32.f32 %v1997
  %v2028 = vcvt.s32.f32 %v2011
  %v2029 = vcvt.s32.f32 %v2025
  %v2030 = vsel %vm1725, %v1763, %v1714
  %v2031 = vsel %vm1725, %v1765, %v1716
  %v2032 = vsel %vm1725, %v1768, %v1719
  %v2033 = vsel %vm1725, %v1770, %v1721
  %vm2034 = vcmp.eq.s32.totalorder %v1724, 55
  %v2035 = vsel %vm2034, %v2026, %v2030
  %v2036 = vsel %vm2034, %v2027, %v2031
  %v2037 = vsel %vm2034, %v2028, %v2032
  %v2038 = vsel %vm2034, %v2029, %v2033
  %v2039 = vpack.c.bf16 %v2035, %v2035
  %v2040 = vpack.c.bf16 %v2036, %v2036
  %v2041 = vpack.c.bf16 %v2037, %v2037
  %v2042 = vpack.c.bf16 %v2038, %v2038
  %2043 = vst [vmem:[%s5] sm:$0xf] %v2039
  %2044 = vst [vmem:[%s5 + $0x4] sm:$0xf] %v2040
  %2045 = vst [vmem:[%s5 + $0x8] sm:$0xf] %v2041
  %2046 = vst [vmem:[%s5 + $0xc] sm:$0xf] %v2042
  %vm2047 = vcmp.eq.s32.totalorder %v1724, 0
  %vm2048 = vcmp.eq.s32.totalorder %v1724, 1
  %vm2049 = vcmp.eq.s32.totalorder %v1724, 2
  %vm2050 = vcmp.eq.s32.totalorder %v1724, 3
  %v2051 = vstv %s1961
  %v2052 = vsel %vm2050, %v2051, 0.0
  %v2053 = vstv %s1937
  %v2054 = vsel %vm2049, %v2053, %v2052
  %v2055 = vstv %s1827
  %v2056 = vsel %vm2048, %v2055, %v2054
  %v2057 = vstv %s1807
  %v2058 = vsel %vm2047, %v2057, %v2056
  %2059 = vst [vmem:[%s6] sm:$0x1] %v2058
  // Predicated region
  $region22: #{aptai_forward.1} parent=0 // pred_check
    _
  $region23: #{aptai_forward.1} parent=0 // pred_check_branch
    %2061 = sbr.rel (0) target = $region25
  $region24: #{aptai_forward.1} parent=0 // pred_region
    _
  $region25: #{aptai_forward.1} parent=0 // pred_fallthru
    _
  // Predicated region
  $region26: #{aptai_forward.1} parent=0 // pred_check
    _
  $region27: #{aptai_forward.1} parent=0 // pred_check_branch
    %2063 = sbr.rel (0) target = $region29
  $region28: #{aptai_forward.1} parent=0 // pred_region
    _
  $region29: #{aptai_forward.1} parent=0 // pred_fallthru
    _
  // Predicated region
  $region30: #{aptai_forward.1} parent=0 // pred_check
    _
  $region31: #{aptai_forward.1} parent=0 // pred_check_branch
    %2065 = sbr.rel (0) target = $region33
  $region32: #{aptai_forward.1} parent=0 // pred_region
    _
  $region33: #{aptai_forward.1} parent=0 // pred_fallthru
    _
  // Predicated region
  $region34: #{aptai_forward.1} parent=0 // pred_check
    _
  $region35: #{aptai_forward.1} parent=0 // pred_check_branch
    %2067 = sbr.rel (0) target = $region37
  $region36: #{aptai_forward.1} parent=0 // pred_region
    _
  $region37: #{aptai_forward.1} parent=0 // pred_fallthru
    _

</llo_original>
